<compile_context>
chip_gen: v6e
topology: v6e:2x2x1
jax: 0.10.0
libtpu: 0.0.40
codegen_flags: <defaults>
</compile_context>

<pallas_src>
import functools
import math

import jax
import jax.numpy as jnp
from jax.experimental import pallas as pl
from jax.experimental.pallas import tpu as pltpu


def _round_up(x, m):
    return ((x + m - 1) // m) * m


def _lane_tile(m):
    """Lane (M) tile: single full-M block for small M, 2048-wide stream otherwise."""
    mp = _round_up(m, 128)
    if mp <= 2048:
        return mp
    return 2048


# ----------------------------- Pallas kernel --------------------------------


def conv_mm_kernel(w_ref, x_ref, o_ref, *, relu):
    """One lane tile of act(W @ X).

    W: (cp, kp) bf16 with BN scale folded in and the bias stored as an extra
    column; X: (kp, TILE) bf16 with a constant-1 row at the bias column index.
    K is a single block (no accumulator scratch / phase logic); accumulation is
    f32 on the MXU, the epilogue is just an optional ReLU + cast.
    """
    y = jnp.dot(w_ref[...], x_ref[...], preferred_element_type=jnp.float32)
    if relu:
        y = jnp.maximum(y, 0.0)
    o_ref[...] = y.astype(o_ref.dtype)


# ----------------------------- Pallas wrapper --------------------------------


def matmul_ready(p, x, relu=True, out_dtype=jnp.bfloat16):
    """p: prepared weight dict (wq:(cp,kp) bf16, K, cout); x: (K, M) activations.

    Returns the padded (cp, mp) output; callers slice [:cout, :M].
    """
    wq, K = p["wq"], p["K"]
    cp, kp = wq.shape
    M = x.shape[1]
    tile = _lane_tile(M)
    mp = _round_up(M, tile)

    # Activations + the constant-1 bias row (bias was folded into W at init).
    xq = jnp.zeros((kp, mp), jnp.bfloat16)
    xq = xq.at[:K, :M].set(x.astype(jnp.bfloat16))
    xq = xq.at[K, :].set(1.0)

    return pl.pallas_call(
        functools.partial(conv_mm_kernel, relu=relu),
        out_shape=jax.ShapeDtypeStruct((cp, mp), out_dtype),
        grid_spec=pltpu.PrefetchScalarGridSpec(
            num_scalar_prefetch=0,
            grid=(mp // tile,),
            in_specs=[
                pl.BlockSpec((cp, kp), lambda j: (0, 0)),    # weights (resident)
                pl.BlockSpec((kp, tile), lambda j: (0, j)),  # activations
            ],
            out_specs=pl.BlockSpec((cp, tile), lambda j: (0, j)),
        ),
        compiler_params=pltpu.CompilerParams(
            dimension_semantics=("parallel",),
            vmem_limit_bytes=48 * 1024 * 1024),
    )(wq, xq)


# ----------------------------- conv / blocks (XLA glue + Pallas hot path) ----


def im2col_cf(x, kh, kw):
    """x: (C, N, H, W), stride 1, 'same' pad -> (kh*kw*C, N, H, W), tap-major (i, j, c)."""
    c, n, h, w = x.shape
    ph, pw = kh // 2, kw // 2
    xp = jnp.pad(x, ((0, 0), (0, 0), (ph, ph), (pw, pw)))
    taps = []
    for i in range(kh):
        for j in range(kw):
            taps.append(xp[:, :, i:i + h, j:j + w])
    return jnp.concatenate(taps, axis=0)


def conv_forward(p, x, relu=True, out_dtype=jnp.bfloat16):
    """x: (Cin, N, H, W); p: prepared kh x kw conv (BN scale + bias pre-folded)."""
    kh, kw = p["kh"], p["kw"]
    c, n, h, w = x.shape
    m = n * h * w
    x = x.astype(jnp.bfloat16)
    if kh == 1 and kw == 1:
        patches = x.reshape(c, m)
    else:
        patches = im2col_cf(x, kh, kw).reshape(kh * kw * c, m)
    y = matmul_ready(p, patches, relu=relu, out_dtype=out_dtype)
    return y[:p["cout"], :m].reshape(p["cout"], n, h, w)


def avgpool2(x):  # glue: 2x2 average pooling, channels-first
    c, n, h, w = x.shape
    return (x.reshape(c, n, h // 2, 2, w // 2, 2)
             .mean(axis=(3, 5), dtype=jnp.float32).astype(x.dtype))


def upsample2(x):  # glue: nearest-neighbour 2x upsampling, channels-first
    return jnp.repeat(jnp.repeat(x, 2, axis=2), 2, axis=3)


def inception(p, x, add=None):
    """One inception module: merged 1x1 stage + ONE fused 3x3/5x5/7x7 branch matmul.

    If `add` is given, the hourglass skip-add is fused into the stage1 matmul
    as [W | W] @ [x ; add] (equivalent to conv(x + add) on the MXU).
    """
    b, m = p["b"], p["m"]
    c, n, h, w = x.shape
    M = n * h * w
    x = x.astype(jnp.bfloat16)
    if add is None:
        s1 = matmul_ready(p["stage1"], x.reshape(c, M))
    else:
        xin = jnp.concatenate(
            [x.reshape(c, M), add.astype(jnp.bfloat16).reshape(c, M)], axis=0)
        s1 = matmul_ready(p["stage1_dual"], xin)
    c1 = p["stage1"]["cout"]                       # b + 3m
    s1 = s1[:c1, :M].reshape(c1, n, h, w)

    y0 = s1[:b]                                    # 1x1-only branch
    branch_in = s1[b:]                             # the 3m spatial-branch channels
    patches = im2col_cf(branch_in, 7, 7).reshape(49 * 3 * m, M)
    y123 = matmul_ready(p["stage2"], patches)      # fused 3x3|5x5|7x7 -> (3b, M)
    y123 = y123[:3 * b, :M].reshape(3 * b, n, h, w)
    return jnp.concatenate([y0, y123], axis=0)


def hg_level(x, p, depth):
    """One hourglass level. Returns (skip, upsampled) with the add deferred into
    the consumer's stage1 matmul."""
    skip = inception(p["skip"], x)
    d = avgpool2(x)
    d = inception(p["down1"], d)
    if depth > 1:
        inner_skip, inner_up = hg_level(d, p["inner"], depth - 1)
        d = inception(p["down2"], inner_skip, add=inner_up)
    else:
        d = inception(p["inner"], d)
        d = inception(p["down2"], d)
    u = upsample2(d)
    return skip, u


# ----------------------------- parameter init (all weight prep hoisted here) --


def conv_to_mat(w):
    """(kh, kw, cin, cout) -> (cout, kh*kw*cin), matching tap-major im2col."""
    kh, kw, cin, cout = w.shape
    return jnp.transpose(w, (3, 0, 1, 2)).reshape(cout, kh * kw * cin)


def prep_matmul_weight(wmat, bias):
    """Fold bias into an extra weight column, pad to (16k sublanes, 16k K), bf16."""
    cout, K = wmat.shape
    cp = _round_up(cout, 16)            # full bf16-packed output sublane tiles
    kp = _round_up(K + 1, 16)           # +1: bias column; bf16 sublane packing
    wq = jnp.zeros((cp, kp), jnp.float32)
    wq = wq.at[:cout, :K].set(wmat)
    wq = wq.at[:cout, K].set(bias)
    return dict(wq=wq.astype(jnp.bfloat16), K=K, cout=cout)


def init_conv(key, kh, kw, cin, cout):
    k1, k2, k3 = jax.random.split(key, 3)
    w = jax.random.normal(k1, (kh, kw, cin, cout), jnp.float32)
    w = w * (1.0 / math.sqrt(kh * kw * cin))
    # eval-mode BatchNorm (synthetic running stats) folded into the conv weight
    scale = 1.0 + 0.1 * jax.random.normal(k2, (cout,), jnp.float32)
    bias = 0.1 * jax.random.normal(k3, (cout,), jnp.float32)
    return dict(w=w * scale[None, None, None, :], bias=bias)


def prep_conv(key, kh, kw, cin, cout):
    c = init_conv(key, kh, kw, cin, cout)
    p = prep_matmul_weight(conv_to_mat(c["w"]), c["bias"])
    p.update(kh=kh, kw=kw)
    return p


def init_inception(key, cin, cout, m=4):
    assert cout % 4 == 0
    b = cout // 4
    ks = jax.random.split(key, 7)
    c0 = init_conv(ks[0], 1, 1, cin, b)
    c1a = init_conv(ks[1], 1, 1, cin, m)
    c2a = init_conv(ks[3], 1, 1, cin, m)
    c3a = init_conv(ks[5], 1, 1, cin, m)
    c1b = init_conv(ks[2], 3, 3, m, b)
    c2b = init_conv(ks[4], 5, 5, m, b)
    c3b = init_conv(ks[6], 7, 7, m, b)

    # stage1: merged 1x1 branch-entry convs (b0 | b1a | b2a | b3a)
    w1 = jnp.concatenate([c0["w"], c1a["w"], c2a["w"], c3a["w"]], axis=-1)
    b1 = jnp.concatenate([c0["bias"], c1a["bias"], c2a["bias"], c3a["bias"]])
    wmat1 = conv_to_mat(w1)                                   # (b+3m, cin)
    stage1 = prep_matmul_weight(wmat1, b1)
    # dual variant: fused hourglass skip-add  [W | W] @ [x ; u]
    stage1_dual = prep_matmul_weight(jnp.concatenate([wmat1, wmat1], axis=1), b1)

    # stage2: the three spatial convs zero-padded to 7x7 and block-stacked
    wfused = jnp.zeros((7, 7, 3 * m, 3 * b), jnp.float32)
    wfused = wfused.at[2:5, 2:5, 0:m, 0:b].set(c1b["w"])          # 3x3 center
    wfused = wfused.at[1:6, 1:6, m:2 * m, b:2 * b].set(c2b["w"])  # 5x5 center
    wfused = wfused.at[:, :, 2 * m:3 * m, 2 * b:3 * b].set(c3b["w"])
    b2 = jnp.concatenate([c1b["bias"], c2b["bias"], c3b["bias"]])
    stage2 = prep_matmul_weight(conv_to_mat(wfused), b2)

    return dict(b=b, m=m, stage1=stage1, stage1_dual=stage1_dual, stage2=stage2)


def init_level(key, c, depth):
    ks = jax.random.split(key, 4)
    p = dict(
        skip=init_inception(ks[0], c, c),
        down1=init_inception(ks[1], c, c),
        down2=init_inception(ks[2], c, c),
    )
    p["inner"] = (init_level(ks[3], c, depth - 1) if depth > 1
                  else init_inception(ks[3], c, c))
    return p


def init_hg_model(key, base=8, depth=2):
    ks = jax.random.split(key, 4)
    return dict(
        stem=prep_conv(ks[0], 7, 7, 3, base),
        hg=init_level(ks[1], base, depth),
        post=init_inception(ks[2], base, base),
        pred=prep_conv(ks[3], 3, 3, base, 1),
        depth=depth,
    )


# ----------------------------- full forward ----------------------------------


def hg_model_forward(x_nchw, params):
    """HGModel.forward: RGB image (N,3,H,W) -> depth prediction (N,1,H,W)."""
    x = jnp.transpose(x_nchw, (1, 0, 2, 3))                 # NCHW -> CNHW (planar)
    x = conv_forward(params["stem"], x)                     # 7x7 stem conv + BN + ReLU
    skip, up = hg_level(x, params["hg"], params["depth"])   # nested hourglass
    x = inception(params["post"], skip, add=up)             # fused final skip-add
    x = conv_forward(params["pred"], x, relu=False,
                     out_dtype=jnp.float32)                 # 3x3 conv -> 1 channel
    return jnp.transpose(x, (1, 0, 2, 3))                   # CNHW -> NCHW


# ----------------------------- main -------------------------------------------

if __name__ == "__main__":
    key = jax.random.PRNGKey(0)
    kx, kp = jax.random.split(key)

    # small, module-consistent shapes: batch=2, RGB input, 16x16 spatial
    x = jax.random.normal(kx, (2, 3, 16, 16), jnp.float32)
    params = init_hg_model(kp, base=8, depth=2)

    fwd = jax.jit(lambda inp: hg_model_forward(inp, params))
    pred = fwd(x)
    jax.block_until_ready(pred)

    assert pred.shape == (2, 1, 16, 16), pred.shape
    assert pred.dtype == jnp.float32
    assert bool(jnp.all(jnp.isfinite(pred)))
    print("KERNEL_OK")
</pallas_src>

<mosaic_0001>
module attributes {stable_mosaic.version = 11 : i64} {
  func.func @conv_mm_kernel(%arg0: i32, %arg1: memref<16x160xbf16, #tpu.memory_space<vmem>>, %arg2: memref<160x512xbf16, #tpu.memory_space<vmem>>, %arg3: memref<16x512xbf16, #tpu.memory_space<vmem>>) attributes {dimension_semantics = [#tpu.dimension_semantics<parallel>], iteration_bounds = array<i64: 1>, scalar_prefetch = 0 : i64, scratch_operands = 0 : i64, tpu.core_type = #tpu.core_type<tc>, window_params = [{pipeline_mode = #tpu.pipeline_mode<synchronous>, transform_indices = @transform_0, window_bounds = array<i64: 16, 160>}, {transform_indices = @transform_1, window_bounds = array<i64: 160, 512>}, {transform_indices = @transform_2, window_bounds = array<i64: 16, 512>}]} {
    %c0 = arith.constant 0 : index
    %c0_0 = arith.constant 0 : index
    %0 = vector.load %arg1[%c0, %c0_0] : memref<16x160xbf16, #tpu.memory_space<vmem>>, vector<16x160xbf16>
    %c0_1 = arith.constant 0 : index
    %c0_2 = arith.constant 0 : index
    %1 = vector.load %arg2[%c0_1, %c0_2] : memref<160x512xbf16, #tpu.memory_space<vmem>>, vector<160x512xbf16>
    %cst = arith.constant dense<0.000000e+00> : vector<16x512xf32>
    %2 = tpu.matmul %0, %1, %cst {dimension_numbers = #tpu.dot_dimension_numbers<[1], [0], [0], [1], [0, 0, 1, 1], [], []>} : vector<16x160xbf16>, vector<160x512xbf16>, vector<16x512xf32> -> vector<16x512xf32>
    %cst_3 = arith.constant 0.000000e+00 : f32
    %3 = vector.broadcast %cst_3 : f32 to vector<16x512xf32>
    %4 = arith.maximumf %2, %3 : vector<16x512xf32>
    %5 = arith.truncf %4 : vector<16x512xf32> to vector<16x512xbf16>
    %c0_4 = arith.constant 0 : index
    %c0_5 = arith.constant 0 : index
    %6 = vector.load %arg3[%c0_4, %c0_5] : memref<16x512xbf16, #tpu.memory_space<vmem>>, vector<16x512xbf16>
    tpu.vector_store %arg3[%c0_4, %c0_5], %5 {strides = array<i32>} : memref<16x512xbf16, #tpu.memory_space<vmem>>, vector<16x512xbf16>,
    return
  }
  func.func @transform_0(%arg0: i32) -> (i32, i32) {
    %c0_i32 = arith.constant 0 : i32
    %c0_i32_0 = arith.constant 0 : i32
    %c0_i32_1 = arith.constant 0 : i32
    return %c0_i32, %c0_i32_0 : i32, i32
  }
  func.func @transform_1(%arg0: i32) -> (i32, i32) {
    %c0_i32 = arith.constant 0 : i32
    %c0_i32_0 = arith.constant 0 : i32
    return %c0_i32, %arg0 : i32, i32
  }
  func.func @transform_2(%arg0: i32) -> (i32, i32) {
    %c0_i32 = arith.constant 0 : i32
    %c0_i32_0 = arith.constant 0 : i32
    return %c0_i32, %arg0 : i32, i32
  }
}

module attributes {stable_mosaic.version = 11 : i64} {
  func.func @conv_mm_kernel(%arg0: i32, %arg1: memref<16x16xbf16, #tpu.memory_space<vmem>>, %arg2: memref<16x512xbf16, #tpu.memory_space<vmem>>, %arg3: memref<16x512xbf16, #tpu.memory_space<vmem>>) attributes {dimension_semantics = [#tpu.dimension_semantics<parallel>], iteration_bounds = array<i64: 1>, scalar_prefetch = 0 : i64, scratch_operands = 0 : i64, tpu.core_type = #tpu.core_type<tc>, window_params = [{pipeline_mode = #tpu.pipeline_mode<synchronous>, transform_indices = @transform_0, window_bounds = array<i64: 16, 16>}, {transform_indices = @transform_1, window_bounds = array<i64: 16, 512>}, {transform_indices = @transform_2, window_bounds = array<i64: 16, 512>}]} {
    %c0 = arith.constant 0 : index
    %c0_0 = arith.constant 0 : index
    %0 = vector.load %arg1[%c0, %c0_0] : memref<16x16xbf16, #tpu.memory_space<vmem>>, vector<16x16xbf16>
    %c0_1 = arith.constant 0 : index
    %c0_2 = arith.constant 0 : index
    %1 = vector.load %arg2[%c0_1, %c0_2] : memref<16x512xbf16, #tpu.memory_space<vmem>>, vector<16x512xbf16>
    %cst = arith.constant dense<0.000000e+00> : vector<16x512xf32>
    %2 = tpu.matmul %0, %1, %cst {dimension_numbers = #tpu.dot_dimension_numbers<[1], [0], [0], [1], [0, 0, 1, 1], [], []>} : vector<16x16xbf16>, vector<16x512xbf16>, vector<16x512xf32> -> vector<16x512xf32>
    %cst_3 = arith.constant 0.000000e+00 : f32
    %3 = vector.broadcast %cst_3 : f32 to vector<16x512xf32>
    %4 = arith.maximumf %2, %3 : vector<16x512xf32>
    %5 = arith.truncf %4 : vector<16x512xf32> to vector<16x512xbf16>
    %c0_4 = arith.constant 0 : index
    %c0_5 = arith.constant 0 : index
    %6 = vector.load %arg3[%c0_4, %c0_5] : memref<16x512xbf16, #tpu.memory_space<vmem>>, vector<16x512xbf16>
    tpu.vector_store %arg3[%c0_4, %c0_5], %5 {strides = array<i32>} : memref<16x512xbf16, #tpu.memory_space<vmem>>, vector<16x512xbf16>,
    return
  }
  func.func @transform_0(%arg0: i32) -> (i32, i32) {
    %c0_i32 = arith.constant 0 : i32
    %c0_i32_0 = arith.constant 0 : i32
    %c0_i32_1 = arith.constant 0 : i32
    return %c0_i32, %c0_i32_0 : i32, i32
  }
  func.func @transform_1(%arg0: i32) -> (i32, i32) {
    %c0_i32 = arith.constant 0 : i32
    %c0_i32_0 = arith.constant 0 : i32
    return %c0_i32, %arg0 : i32, i32
  }
  func.func @transform_2(%arg0: i32) -> (i32, i32) {
    %c0_i32 = arith.constant 0 : i32
    %c0_i32_0 = arith.constant 0 : i32
    return %c0_i32, %arg0 : i32, i32
  }
}

module attributes {stable_mosaic.version = 11 : i64} {
  func.func @conv_mm_kernel(%arg0: i32, %arg1: memref<16x16xbf16, #tpu.memory_space<vmem>>, %arg2: memref<16x128xbf16, #tpu.memory_space<vmem>>, %arg3: memref<16x128xbf16, #tpu.memory_space<vmem>>) attributes {dimension_semantics = [#tpu.dimension_semantics<parallel>], iteration_bounds = array<i64: 1>, scalar_prefetch = 0 : i64, scratch_operands = 0 : i64, tpu.core_type = #tpu.core_type<tc>, window_params = [{pipeline_mode = #tpu.pipeline_mode<synchronous>, transform_indices = @transform_0, window_bounds = array<i64: 16, 16>}, {transform_indices = @transform_1, window_bounds = array<i64: 16, 128>}, {transform_indices = @transform_2, window_bounds = array<i64: 16, 128>}]} {
    %c0 = arith.constant 0 : index
    %c0_0 = arith.constant 0 : index
    %0 = vector.load %arg1[%c0, %c0_0] : memref<16x16xbf16, #tpu.memory_space<vmem>>, vector<16x16xbf16>
    %c0_1 = arith.constant 0 : index
    %c0_2 = arith.constant 0 : index
    %1 = vector.load %arg2[%c0_1, %c0_2] : memref<16x128xbf16, #tpu.memory_space<vmem>>, vector<16x128xbf16>
    %cst = arith.constant dense<0.000000e+00> : vector<16x128xf32>
    %2 = tpu.matmul %0, %1, %cst {dimension_numbers = #tpu.dot_dimension_numbers<[1], [0], [0], [1], [0, 0, 1, 1], [], []>} : vector<16x16xbf16>, vector<16x128xbf16>, vector<16x128xf32> -> vector<16x128xf32>
    %cst_3 = arith.constant 0.000000e+00 : f32
    %3 = vector.broadcast %cst_3 : f32 to vector<16x128xf32>
    %4 = arith.maximumf %2, %3 : vector<16x128xf32>
    %5 = arith.truncf %4 : vector<16x128xf32> to vector<16x128xbf16>
    %c0_4 = arith.constant 0 : index
    %c0_5 = arith.constant 0 : index
    %6 = vector.load %arg3[%c0_4, %c0_5] : memref<16x128xbf16, #tpu.memory_space<vmem>>, vector<16x128xbf16>
    tpu.vector_store %arg3[%c0_4, %c0_5], %5 {strides = array<i32>} : memref<16x128xbf16, #tpu.memory_space<vmem>>, vector<16x128xbf16>,
    return
  }
  func.func @transform_0(%arg0: i32) -> (i32, i32) {
    %c0_i32 = arith.constant 0 : i32
    %c0_i32_0 = arith.constant 0 : i32
    %c0_i32_1 = arith.constant 0 : i32
    return %c0_i32, %c0_i32_0 : i32, i32
  }
  func.func @transform_1(%arg0: i32) -> (i32, i32) {
    %c0_i32 = arith.constant 0 : i32
    %c0_i32_0 = arith.constant 0 : i32
    return %c0_i32, %arg0 : i32, i32
  }
  func.func @transform_2(%arg0: i32) -> (i32, i32) {
    %c0_i32 = arith.constant 0 : i32
    %c0_i32_0 = arith.constant 0 : i32
    return %c0_i32, %arg0 : i32, i32
  }
}

module attributes {stable_mosaic.version = 11 : i64} {
  func.func @conv_mm_kernel(%arg0: i32, %arg1: memref<16x592xbf16, #tpu.memory_space<vmem>>, %arg2: memref<592x128xbf16, #tpu.memory_space<vmem>>, %arg3: memref<16x128xbf16, #tpu.memory_space<vmem>>) attributes {dimension_semantics = [#tpu.dimension_semantics<parallel>], iteration_bounds = array<i64: 1>, scalar_prefetch = 0 : i64, scratch_operands = 0 : i64, tpu.core_type = #tpu.core_type<tc>, window_params = [{pipeline_mode = #tpu.pipeline_mode<synchronous>, transform_indices = @transform_0, window_bounds = array<i64: 16, 592>}, {transform_indices = @transform_1, window_bounds = array<i64: 592, 128>}, {transform_indices = @transform_2, window_bounds = array<i64: 16, 128>}]} {
    %c0 = arith.constant 0 : index
    %c0_0 = arith.constant 0 : index
    %0 = vector.load %arg1[%c0, %c0_0] : memref<16x592xbf16, #tpu.memory_space<vmem>>, vector<16x592xbf16>
    %c0_1 = arith.constant 0 : index
    %c0_2 = arith.constant 0 : index
    %1 = vector.load %arg2[%c0_1, %c0_2] : memref<592x128xbf16, #tpu.memory_space<vmem>>, vector<592x128xbf16>
    %cst = arith.constant dense<0.000000e+00> : vector<16x128xf32>
    %2 = tpu.matmul %0, %1, %cst {dimension_numbers = #tpu.dot_dimension_numbers<[1], [0], [0], [1], [0, 0, 1, 1], [], []>} : vector<16x592xbf16>, vector<592x128xbf16>, vector<16x128xf32> -> vector<16x128xf32>
    %cst_3 = arith.constant 0.000000e+00 : f32
    %3 = vector.broadcast %cst_3 : f32 to vector<16x128xf32>
    %4 = arith.maximumf %2, %3 : vector<16x128xf32>
    %5 = arith.truncf %4 : vector<16x128xf32> to vector<16x128xbf16>
    %c0_4 = arith.constant 0 : index
    %c0_5 = arith.constant 0 : index
    %6 = vector.load %arg3[%c0_4, %c0_5] : memref<16x128xbf16, #tpu.memory_space<vmem>>, vector<16x128xbf16>
    tpu.vector_store %arg3[%c0_4, %c0_5], %5 {strides = array<i32>} : memref<16x128xbf16, #tpu.memory_space<vmem>>, vector<16x128xbf16>,
    return
  }
  func.func @transform_0(%arg0: i32) -> (i32, i32) {
    %c0_i32 = arith.constant 0 : i32
    %c0_i32_0 = arith.constant 0 : i32
    %c0_i32_1 = arith.constant 0 : i32
    return %c0_i32, %c0_i32_0 : i32, i32
  }
  func.func @transform_1(%arg0: i32) -> (i32, i32) {
    %c0_i32 = arith.constant 0 : i32
    %c0_i32_0 = arith.constant 0 : i32
    return %c0_i32, %arg0 : i32, i32
  }
  func.func @transform_2(%arg0: i32) -> (i32, i32) {
    %c0_i32 = arith.constant 0 : i32
    %c0_i32_0 = arith.constant 0 : i32
    return %c0_i32, %arg0 : i32, i32
  }
}

module attributes {stable_mosaic.version = 11 : i64} {
  func.func @conv_mm_kernel(%arg0: i32, %arg1: memref<16x32xbf16, #tpu.memory_space<vmem>>, %arg2: memref<32x128xbf16, #tpu.memory_space<vmem>>, %arg3: memref<16x128xbf16, #tpu.memory_space<vmem>>) attributes {dimension_semantics = [#tpu.dimension_semantics<parallel>], iteration_bounds = array<i64: 1>, scalar_prefetch = 0 : i64, scratch_operands = 0 : i64, tpu.core_type = #tpu.core_type<tc>, window_params = [{pipeline_mode = #tpu.pipeline_mode<synchronous>, transform_indices = @transform_0, window_bounds = array<i64: 16, 32>}, {transform_indices = @transform_1, window_bounds = array<i64: 32, 128>}, {transform_indices = @transform_2, window_bounds = array<i64: 16, 128>}]} {
    %c0 = arith.constant 0 : index
    %c0_0 = arith.constant 0 : index
    %0 = vector.load %arg1[%c0, %c0_0] : memref<16x32xbf16, #tpu.memory_space<vmem>>, vector<16x32xbf16>
    %c0_1 = arith.constant 0 : index
    %c0_2 = arith.constant 0 : index
    %1 = vector.load %arg2[%c0_1, %c0_2] : memref<32x128xbf16, #tpu.memory_space<vmem>>, vector<32x128xbf16>
    %cst = arith.constant dense<0.000000e+00> : vector<16x128xf32>
    %2 = tpu.matmul %0, %1, %cst {dimension_numbers = #tpu.dot_dimension_numbers<[1], [0], [0], [1], [0, 0, 1, 1], [], []>} : vector<16x32xbf16>, vector<32x128xbf16>, vector<16x128xf32> -> vector<16x128xf32>
    %cst_3 = arith.constant 0.000000e+00 : f32
    %3 = vector.broadcast %cst_3 : f32 to vector<16x128xf32>
    %4 = arith.maximumf %2, %3 : vector<16x128xf32>
    %5 = arith.truncf %4 : vector<16x128xf32> to vector<16x128xbf16>
    %c0_4 = arith.constant 0 : index
    %c0_5 = arith.constant 0 : index
    %6 = vector.load %arg3[%c0_4, %c0_5] : memref<16x128xbf16, #tpu.memory_space<vmem>>, vector<16x128xbf16>
    tpu.vector_store %arg3[%c0_4, %c0_5], %5 {strides = array<i32>} : memref<16x128xbf16, #tpu.memory_space<vmem>>, vector<16x128xbf16>,
    return
  }
  func.func @transform_0(%arg0: i32) -> (i32, i32) {
    %c0_i32 = arith.constant 0 : i32
    %c0_i32_0 = arith.constant 0 : i32
    %c0_i32_1 = arith.constant 0 : i32
    return %c0_i32, %c0_i32_0 : i32, i32
  }
  func.func @transform_1(%arg0: i32) -> (i32, i32) {
    %c0_i32 = arith.constant 0 : i32
    %c0_i32_0 = arith.constant 0 : i32
    return %c0_i32, %arg0 : i32, i32
  }
  func.func @transform_2(%arg0: i32) -> (i32, i32) {
    %c0_i32 = arith.constant 0 : i32
    %c0_i32_0 = arith.constant 0 : i32
    return %c0_i32, %arg0 : i32, i32
  }
}

module attributes {stable_mosaic.version = 11 : i64} {
  func.func @conv_mm_kernel(%arg0: i32, %arg1: memref<16x592xbf16, #tpu.memory_space<vmem>>, %arg2: memref<592x512xbf16, #tpu.memory_space<vmem>>, %arg3: memref<16x512xbf16, #tpu.memory_space<vmem>>) attributes {dimension_semantics = [#tpu.dimension_semantics<parallel>], iteration_bounds = array<i64: 1>, scalar_prefetch = 0 : i64, scratch_operands = 0 : i64, tpu.core_type = #tpu.core_type<tc>, window_params = [{pipeline_mode = #tpu.pipeline_mode<synchronous>, transform_indices = @transform_0, window_bounds = array<i64: 16, 592>}, {transform_indices = @transform_1, window_bounds = array<i64: 592, 512>}, {transform_indices = @transform_2, window_bounds = array<i64: 16, 512>}]} {
    %c0 = arith.constant 0 : index
    %c0_0 = arith.constant 0 : index
    %0 = vector.load %arg1[%c0, %c0_0] : memref<16x592xbf16, #tpu.memory_space<vmem>>, vector<16x592xbf16>
    %c0_1 = arith.constant 0 : index
    %c0_2 = arith.constant 0 : index
    %1 = vector.load %arg2[%c0_1, %c0_2] : memref<592x512xbf16, #tpu.memory_space<vmem>>, vector<592x512xbf16>
    %cst = arith.constant dense<0.000000e+00> : vector<16x512xf32>
    %2 = tpu.matmul %0, %1, %cst {dimension_numbers = #tpu.dot_dimension_numbers<[1], [0], [0], [1], [0, 0, 1, 1], [], []>} : vector<16x592xbf16>, vector<592x512xbf16>, vector<16x512xf32> -> vector<16x512xf32>
    %cst_3 = arith.constant 0.000000e+00 : f32
    %3 = vector.broadcast %cst_3 : f32 to vector<16x512xf32>
    %4 = arith.maximumf %2, %3 : vector<16x512xf32>
    %5 = arith.truncf %4 : vector<16x512xf32> to vector<16x512xbf16>
    %c0_4 = arith.constant 0 : index
    %c0_5 = arith.constant 0 : index
    %6 = vector.load %arg3[%c0_4, %c0_5] : memref<16x512xbf16, #tpu.memory_space<vmem>>, vector<16x512xbf16>
    tpu.vector_store %arg3[%c0_4, %c0_5], %5 {strides = array<i32>} : memref<16x512xbf16, #tpu.memory_space<vmem>>, vector<16x512xbf16>,
    return
  }
  func.func @transform_0(%arg0: i32) -> (i32, i32) {
    %c0_i32 = arith.constant 0 : i32
    %c0_i32_0 = arith.constant 0 : i32
    %c0_i32_1 = arith.constant 0 : i32
    return %c0_i32, %c0_i32_0 : i32, i32
  }
  func.func @transform_1(%arg0: i32) -> (i32, i32) {
    %c0_i32 = arith.constant 0 : i32
    %c0_i32_0 = arith.constant 0 : i32
    return %c0_i32, %arg0 : i32, i32
  }
  func.func @transform_2(%arg0: i32) -> (i32, i32) {
    %c0_i32 = arith.constant 0 : i32
    %c0_i32_0 = arith.constant 0 : i32
    return %c0_i32, %arg0 : i32, i32
  }
}

module attributes {stable_mosaic.version = 11 : i64} {
  func.func @conv_mm_kernel(%arg0: i32, %arg1: memref<16x32xbf16, #tpu.memory_space<vmem>>, %arg2: memref<32x512xbf16, #tpu.memory_space<vmem>>, %arg3: memref<16x512xbf16, #tpu.memory_space<vmem>>) attributes {dimension_semantics = [#tpu.dimension_semantics<parallel>], iteration_bounds = array<i64: 1>, scalar_prefetch = 0 : i64, scratch_operands = 0 : i64, tpu.core_type = #tpu.core_type<tc>, window_params = [{pipeline_mode = #tpu.pipeline_mode<synchronous>, transform_indices = @transform_0, window_bounds = array<i64: 16, 32>}, {transform_indices = @transform_1, window_bounds = array<i64: 32, 512>}, {transform_indices = @transform_2, window_bounds = array<i64: 16, 512>}]} {
    %c0 = arith.constant 0 : index
    %c0_0 = arith.constant 0 : index
    %0 = vector.load %arg1[%c0, %c0_0] : memref<16x32xbf16, #tpu.memory_space<vmem>>, vector<16x32xbf16>
    %c0_1 = arith.constant 0 : index
    %c0_2 = arith.constant 0 : index
    %1 = vector.load %arg2[%c0_1, %c0_2] : memref<32x512xbf16, #tpu.memory_space<vmem>>, vector<32x512xbf16>
    %cst = arith.constant dense<0.000000e+00> : vector<16x512xf32>
    %2 = tpu.matmul %0, %1, %cst {dimension_numbers = #tpu.dot_dimension_numbers<[1], [0], [0], [1], [0, 0, 1, 1], [], []>} : vector<16x32xbf16>, vector<32x512xbf16>, vector<16x512xf32> -> vector<16x512xf32>
    %cst_3 = arith.constant 0.000000e+00 : f32
    %3 = vector.broadcast %cst_3 : f32 to vector<16x512xf32>
    %4 = arith.maximumf %2, %3 : vector<16x512xf32>
    %5 = arith.truncf %4 : vector<16x512xf32> to vector<16x512xbf16>
    %c0_4 = arith.constant 0 : index
    %c0_5 = arith.constant 0 : index
    %6 = vector.load %arg3[%c0_4, %c0_5] : memref<16x512xbf16, #tpu.memory_space<vmem>>, vector<16x512xbf16>
    tpu.vector_store %arg3[%c0_4, %c0_5], %5 {strides = array<i32>} : memref<16x512xbf16, #tpu.memory_space<vmem>>, vector<16x512xbf16>,
    return
  }
  func.func @transform_0(%arg0: i32) -> (i32, i32) {
    %c0_i32 = arith.constant 0 : i32
    %c0_i32_0 = arith.constant 0 : i32
    %c0_i32_1 = arith.constant 0 : i32
    return %c0_i32, %c0_i32_0 : i32, i32
  }
  func.func @transform_1(%arg0: i32) -> (i32, i32) {
    %c0_i32 = arith.constant 0 : i32
    %c0_i32_0 = arith.constant 0 : i32
    return %c0_i32, %arg0 : i32, i32
  }
  func.func @transform_2(%arg0: i32) -> (i32, i32) {
    %c0_i32 = arith.constant 0 : i32
    %c0_i32_0 = arith.constant 0 : i32
    return %c0_i32, %arg0 : i32, i32
  }
}

module attributes {stable_mosaic.version = 11 : i64} {
  func.func @conv_mm_kernel(%arg0: i32, %arg1: memref<16x80xbf16, #tpu.memory_space<vmem>>, %arg2: memref<80x512xbf16, #tpu.memory_space<vmem>>, %arg3: memref<16x512xf32, #tpu.memory_space<vmem>>) attributes {dimension_semantics = [#tpu.dimension_semantics<parallel>], iteration_bounds = array<i64: 1>, scalar_prefetch = 0 : i64, scratch_operands = 0 : i64, tpu.core_type = #tpu.core_type<tc>, window_params = [{pipeline_mode = #tpu.pipeline_mode<synchronous>, transform_indices = @transform_0, window_bounds = array<i64: 16, 80>}, {transform_indices = @transform_1, window_bounds = array<i64: 80, 512>}, {transform_indices = @transform_2, window_bounds = array<i64: 16, 512>}]} {
    %c0 = arith.constant 0 : index
    %c0_0 = arith.constant 0 : index
    %0 = vector.load %arg1[%c0, %c0_0] : memref<16x80xbf16, #tpu.memory_space<vmem>>, vector<16x80xbf16>
    %c0_1 = arith.constant 0 : index
    %c0_2 = arith.constant 0 : index
    %1 = vector.load %arg2[%c0_1, %c0_2] : memref<80x512xbf16, #tpu.memory_space<vmem>>, vector<80x512xbf16>
    %cst = arith.constant dense<0.000000e+00> : vector<16x512xf32>
    %2 = tpu.matmul %0, %1, %cst {dimension_numbers = #tpu.dot_dimension_numbers<[1], [0], [0], [1], [0, 0, 1, 1], [], []>} : vector<16x80xbf16>, vector<80x512xbf16>, vector<16x512xf32> -> vector<16x512xf32>
    %c0_3 = arith.constant 0 : index
    %c0_4 = arith.constant 0 : index
    %3 = vector.load %arg3[%c0_3, %c0_4] : memref<16x512xf32, #tpu.memory_space<vmem>>, vector<16x512xf32>
    tpu.vector_store %arg3[%c0_3, %c0_4], %2 {strides = array<i32>} : memref<16x512xf32, #tpu.memory_space<vmem>>, vector<16x512xf32>,
    return
  }
  func.func @transform_0(%arg0: i32) -> (i32, i32) {
    %c0_i32 = arith.constant 0 : i32
    %c0_i32_0 = arith.constant 0 : i32
    %c0_i32_1 = arith.constant 0 : i32
    return %c0_i32, %c0_i32_0 : i32, i32
  }
  func.func @transform_1(%arg0: i32) -> (i32, i32) {
    %c0_i32 = arith.constant 0 : i32
    %c0_i32_0 = arith.constant 0 : i32
    return %c0_i32, %arg0 : i32, i32
  }
  func.func @transform_2(%arg0: i32) -> (i32, i32) {
    %c0_i32 = arith.constant 0 : i32
    %c0_i32_0 = arith.constant 0 : i32
    return %c0_i32, %arg0 : i32, i32
  }
}

</mosaic_0001>

<llo_original>
// kernel: _lambda_.18
$region0: #{_lambda_.18}
  #allocation0 [shape = 'u32[]', space=smem, size = 0x4, offset = 0x4, fixed_abs, tag = 'smem constant byte address 0x4 - core index']
  #allocation1 [shape = 'u32[144,128]{1,0:T(1,128)}', space=vmem, size = 0x12000, scoped, tag = 'internal scratch']
  %s0 = inlined_call_operand.vmem [shape: bf16[16,160], index: 0, kind: input, shape index: {}]
  %s1 = inlined_call_operand.vmem [shape: bf16[160,512], index: 1, kind: input, shape index: {}]
  %s2 = inlined_call_operand.vmem [shape: bf16[16,512], index: 2, kind: output, shape index: {}]
  %s3 = sld [smem:[#allocation0]]
  $region18: #{_lambda_.18} parent=0
    _
  %s5 = ssub.s32 1, %s3
  %s6 = scalar_select 0, %s5, %s3
  // Predicated region
  $region2: #{_lambda_.18} parent=0 // pred_check
    _
  $region3: #{_lambda_.18} parent=0 // pred_check_branch
    %8 = sbr.rel (0) target = $region5
  $region4: #{_lambda_.18} parent=0 // pred_region
    _
  $region5: #{_lambda_.18} parent=0 // pred_fallthru
    _
  // Predicated region
  $region6: #{_lambda_.18} parent=0 // pred_check
    _
  $region7: #{_lambda_.18} parent=0 // pred_check_branch
    %10 = sbr.rel (0) target = $region9
  $region8: #{_lambda_.18} parent=0 // pred_region
    _
  $region9: #{_lambda_.18} parent=0 // pred_fallthru
    _
  %v12 = vld [vmem:[%s0] sm:$0xff]
  %v13 = vld [vmem:[%s0 + $0x8] sm:$0xff]
  %v14 = vld [vmem:[%s1] sm:$0xff]
  %v15 = vld [vmem:[%s1 + $0x8] sm:$0xff]
  %v16 = vld [vmem:[%s1 + $0x10] sm:$0xff]
  %v17 = vld [vmem:[%s1 + $0x18] sm:$0xff]
  %v18 = vld [vmem:[%s1 + $0x20] sm:$0xff]
  %v19 = vld [vmem:[%s1 + $0x28] sm:$0xff]
  %v20 = vld [vmem:[%s1 + $0x30] sm:$0xff]
  %v21 = vld [vmem:[%s1 + $0x38] sm:$0xff]
  %v22 = vld [vmem:[%s1 + $0x40] sm:$0xff]
  %v23 = vld [vmem:[%s1 + $0x48] sm:$0xff]
  %v24 = vld [vmem:[%s1 + $0x50] sm:$0xff]
  %v25 = vld [vmem:[%s1 + $0x58] sm:$0xff]
  %v26 = vld [vmem:[%s1 + $0x60] sm:$0xff]
  %v27 = vld [vmem:[%s1 + $0x68] sm:$0xff]
  %v28 = vld [vmem:[%s1 + $0x70] sm:$0xff]
  %v29 = vld [vmem:[%s1 + $0x78] sm:$0xff]
  %v30 = vld [vmem:[%s1 + $0x80] sm:$0xff]
  %v31 = vld [vmem:[%s1 + $0x88] sm:$0xff]
  %v32 = vld [vmem:[%s1 + $0x90] sm:$0xff]
  %v33 = vld [vmem:[%s1 + $0x98] sm:$0xff]
  %v34 = vld [vmem:[%s1 + $0xa0] sm:$0xff]
  %v35 = vld [vmem:[%s1 + $0xa8] sm:$0xff]
  %v36 = vld [vmem:[%s1 + $0xb0] sm:$0xff]
  %v37 = vld [vmem:[%s1 + $0xb8] sm:$0xff]
  %v38 = vld [vmem:[%s1 + $0xc0] sm:$0xff]
  %v39 = vld [vmem:[%s1 + $0xc8] sm:$0xff]
  %v40 = vld [vmem:[%s1 + $0xd0] sm:$0xff]
  %v41 = vld [vmem:[%s1 + $0xd8] sm:$0xff]
  %v42 = vld [vmem:[%s1 + $0xe0] sm:$0xff]
  %v43 = vld [vmem:[%s1 + $0xe8] sm:$0xff]
  %v44 = vld [vmem:[%s1 + $0xf0] sm:$0xff]
  %v45 = vld [vmem:[%s1 + $0xf8] sm:$0xff]
  %v46 = vld [vmem:[%s1 + $0x100] sm:$0xff]
  %v47 = vld [vmem:[%s1 + $0x108] sm:$0xff]
  %v48 = vld [vmem:[%s1 + $0x110] sm:$0xff]
  %v49 = vld [vmem:[%s1 + $0x118] sm:$0xff]
  %v50 = vld [vmem:[%s1 + $0x120] sm:$0xff]
  %v51 = vld [vmem:[%s1 + $0x128] sm:$0xff]
  %v52 = vld [vmem:[%s1 + $0x130] sm:$0xff]
  %v53 = vld [vmem:[%s1 + $0x138] sm:$0xff]
  %v56 = vunpack.c.l.b16 %v12
  %v57 = vunpack.c.h.b16 %v12
  %v58 = vunpack.c.l.b16 %v13
  %v59 = vunpack.c.h.b16 %v13
  %v60 = vpack.c.b16 %v58, %v56
  %v61 = vpack.c.b16 %v59, %v57
  %v103 = vunpack.c.l.b16 %v14
  %v104 = vunpack.c.h.b16 %v14
  %v105 = vunpack.c.l.b16 %v15
  %v106 = vunpack.c.h.b16 %v15
  %v107 = vunpack.c.l.b16 %v16
  %v108 = vunpack.c.h.b16 %v16
  %v109 = vunpack.c.l.b16 %v17
  %v110 = vunpack.c.h.b16 %v17
  %v111 = vunpack.c.l.b16 %v18
  %v112 = vunpack.c.h.b16 %v18
  %v113 = vunpack.c.l.b16 %v19
  %v114 = vunpack.c.h.b16 %v19
  %v115 = vunpack.c.l.b16 %v20
  %v116 = vunpack.c.h.b16 %v20
  %v117 = vunpack.c.l.b16 %v21
  %v118 = vunpack.c.h.b16 %v21
  %v119 = vunpack.c.l.b16 %v22
  %v120 = vunpack.c.h.b16 %v22
  %v121 = vunpack.c.l.b16 %v23
  %v122 = vunpack.c.h.b16 %v23
  %v123 = vunpack.c.l.b16 %v24
  %v124 = vunpack.c.h.b16 %v24
  %v125 = vunpack.c.l.b16 %v25
  %v126 = vunpack.c.h.b16 %v25
  %v127 = vunpack.c.l.b16 %v26
  %v128 = vunpack.c.h.b16 %v26
  %v129 = vunpack.c.l.b16 %v27
  %v130 = vunpack.c.h.b16 %v27
  %v131 = vunpack.c.l.b16 %v28
  %v132 = vunpack.c.h.b16 %v28
  %v133 = vunpack.c.l.b16 %v29
  %v134 = vunpack.c.h.b16 %v29
  %v135 = vunpack.c.l.b16 %v30
  %v136 = vunpack.c.h.b16 %v30
  %v137 = vunpack.c.l.b16 %v31
  %v138 = vunpack.c.h.b16 %v31
  %v139 = vunpack.c.l.b16 %v32
  %v140 = vunpack.c.h.b16 %v32
  %v141 = vunpack.c.l.b16 %v33
  %v142 = vunpack.c.h.b16 %v33
  %v143 = vunpack.c.l.b16 %v34
  %v144 = vunpack.c.h.b16 %v34
  %v145 = vunpack.c.l.b16 %v35
  %v146 = vunpack.c.h.b16 %v35
  %v147 = vunpack.c.l.b16 %v36
  %v148 = vunpack.c.h.b16 %v36
  %v149 = vunpack.c.l.b16 %v37
  %v150 = vunpack.c.h.b16 %v37
  %v151 = vunpack.c.l.b16 %v38
  %v152 = vunpack.c.h.b16 %v38
  %v153 = vunpack.c.l.b16 %v39
  %v154 = vunpack.c.h.b16 %v39
  %v155 = vunpack.c.l.b16 %v40
  %v156 = vunpack.c.h.b16 %v40
  %v157 = vunpack.c.l.b16 %v41
  %v158 = vunpack.c.h.b16 %v41
  %v159 = vunpack.c.l.b16 %v42
  %v160 = vunpack.c.h.b16 %v42
  %v161 = vunpack.c.l.b16 %v43
  %v162 = vunpack.c.h.b16 %v43
  %v163 = vunpack.c.l.b16 %v44
  %v164 = vunpack.c.h.b16 %v44
  %v165 = vunpack.c.l.b16 %v45
  %v166 = vunpack.c.h.b16 %v45
  %v167 = vunpack.c.l.b16 %v46
  %v168 = vunpack.c.h.b16 %v46
  %v169 = vunpack.c.l.b16 %v47
  %v170 = vunpack.c.h.b16 %v47
  %v171 = vunpack.c.l.b16 %v48
  %v172 = vunpack.c.h.b16 %v48
  %v173 = vunpack.c.l.b16 %v49
  %v174 = vunpack.c.h.b16 %v49
  %v175 = vunpack.c.l.b16 %v50
  %v176 = vunpack.c.h.b16 %v50
  %v177 = vunpack.c.l.b16 %v51
  %v178 = vunpack.c.h.b16 %v51
  %v179 = vunpack.c.l.b16 %v52
  %v180 = vunpack.c.h.b16 %v52
  %v181 = vunpack.c.l.b16 %v53
  %v182 = vunpack.c.h.b16 %v53
  %v183 = vpack.c.b16 %v107, %v103
  %v184 = vpack.c.b16 %v108, %v104
  %v185 = vpack.c.b16 %v109, %v105
  %v186 = vpack.c.b16 %v110, %v106
  %v187 = vpack.c.b16 %v115, %v111
  %v188 = vpack.c.b16 %v116, %v112
  %v189 = vpack.c.b16 %v117, %v113
  %v190 = vpack.c.b16 %v118, %v114
  %v191 = vpack.c.b16 %v123, %v119
  %v192 = vpack.c.b16 %v124, %v120
  %v193 = vpack.c.b16 %v125, %v121
  %v194 = vpack.c.b16 %v126, %v122
  %v195 = vpack.c.b16 %v131, %v127
  %v196 = vpack.c.b16 %v132, %v128
  %v197 = vpack.c.b16 %v133, %v129
  %v198 = vpack.c.b16 %v134, %v130
  %v199 = vpack.c.b16 %v139, %v135
  %v200 = vpack.c.b16 %v140, %v136
  %v201 = vpack.c.b16 %v141, %v137
  %v202 = vpack.c.b16 %v142, %v138
  %v203 = vpack.c.b16 %v147, %v143
  %v204 = vpack.c.b16 %v148, %v144
  %v205 = vpack.c.b16 %v149, %v145
  %v206 = vpack.c.b16 %v150, %v146
  %v207 = vpack.c.b16 %v155, %v151
  %v208 = vpack.c.b16 %v156, %v152
  %v209 = vpack.c.b16 %v157, %v153
  %v210 = vpack.c.b16 %v158, %v154
  %v211 = vpack.c.b16 %v163, %v159
  %v212 = vpack.c.b16 %v164, %v160
  %v213 = vpack.c.b16 %v165, %v161
  %v214 = vpack.c.b16 %v166, %v162
  %v215 = vpack.c.b16 %v171, %v167
  %v216 = vpack.c.b16 %v172, %v168
  %v217 = vpack.c.b16 %v173, %v169
  %v218 = vpack.c.b16 %v174, %v170
  %v219 = vpack.c.b16 %v179, %v175
  %v220 = vpack.c.b16 %v180, %v176
  %v221 = vpack.c.b16 %v181, %v177
  %v222 = vpack.c.b16 %v182, %v178
  %vm263 = vcmask 261120
  %v265 = vsel %vm263, %v61, 0
  %267 = vmatprep.subr.bf16.mxu0 %v212
  %268 = vmatpush1.bf16.msra.mxu0 %v211
  %269 = vmatprep.subr.bf16.mxu0 %v208
  %270 = vmatpush1.bf16.msra.mxu0 %v207
  %271 = vmatprep.subr.bf16.mxu0 %v204
  %272 = vmatpush1.bf16.msra.mxu0 %v203
  %273 = vmatprep.subr.bf16.mxu0 %v200
  %274 = vmatpush1.bf16.msra.mxu0 %v199
  %275 = vmatprep.subr.bf16.mxu0 %v196
  %276 = vmatpush1.bf16.msra.mxu0 %v195
  %277 = vmatprep.subr.bf16.mxu0 %v192
  %278 = vmatpush1.bf16.msra.mxu0 %v191
  %279 = vmatprep.subr.bf16.mxu0 %v188
  %280 = vmatpush1.bf16.msra.mxu0 %v187
  %281 = vmatprep.subr.bf16.mxu0 %v184
  %282 = vmatpush1.bf16.msra.mxu0 %v183
  %283 = vmatprep.subr.bf16.mxu0 0
  %284 = vmatpush2.bf16.msra.mxu0 0
  %285 = vmatprep.subr.bf16.mxu0 0
  %286 = vmatpush2.bf16.msra.mxu0 0
  %287 = vmatprep.subr.bf16.mxu0 0
  %288 = vmatpush2.bf16.msra.mxu0 0
  %289 = vmatprep.subr.bf16.mxu0 0
  %290 = vmatpush2.bf16.msra.mxu0 0
  %291 = vmatprep.subr.bf16.mxu0 0
  %292 = vmatpush2.bf16.msra.mxu0 0
  %293 = vmatprep.subr.bf16.mxu0 0
  %294 = vmatpush2.bf16.msra.mxu0 0
  %295 = vmatprep.subr.bf16.mxu0 %v220
  %296 = vmatpush2.bf16.msra.mxu0 %v219
  %297 = vmatprep.subr.bf16.mxu0 %v216
  %298 = vmatpush2.bf16.msra.mxu0 %v215
  %299 = vmatprep.mubr.bf16.mxu0 %v265
  %300 = vmatmul.mubr.bf16.gmra.mxu0 %v60
  %v301 = vpop.f32.mrf.mxu0
  %v302 = vadd.f32 0.0, %v301
  %v303 = vpop.f32.mrf.mxu0
  %v304 = vadd.f32 0.0, %v303
  %v305 = vpop.f32.mrf.mxu0
  %v306 = vadd.f32 0.0, %v305
  %v307 = vpop.f32.mrf.mxu0
  %v308 = vadd.f32 0.0, %v307
  %309 = vdwg.mxu0
  %310 = vmatprep.subr.bf16.mxu0 %v214
  %311 = vmatpush1.bf16.msra.mxu0 %v213
  %312 = vmatprep.subr.bf16.mxu0 %v210
  %313 = vmatpush1.bf16.msra.mxu0 %v209
  %314 = vmatprep.subr.bf16.mxu0 %v206
  %315 = vmatpush1.bf16.msra.mxu0 %v205
  %316 = vmatprep.subr.bf16.mxu0 %v202
  %317 = vmatpush1.bf16.msra.mxu0 %v201
  %318 = vmatprep.subr.bf16.mxu0 %v198
  %319 = vmatpush1.bf16.msra.mxu0 %v197
  %320 = vmatprep.subr.bf16.mxu0 %v194
  %321 = vmatpush1.bf16.msra.mxu0 %v193
  %322 = vmatprep.subr.bf16.mxu0 %v190
  %323 = vmatpush1.bf16.msra.mxu0 %v189
  %324 = vmatprep.subr.bf16.mxu0 %v186
  %325 = vmatpush1.bf16.msra.mxu0 %v185
  %326 = vmatprep.subr.bf16.mxu0 0
  %327 = vmatpush2.bf16.msra.mxu0 0
  %328 = vmatprep.subr.bf16.mxu0 0
  %329 = vmatpush2.bf16.msra.mxu0 0
  %330 = vmatprep.subr.bf16.mxu0 0
  %331 = vmatpush2.bf16.msra.mxu0 0
  %332 = vmatprep.subr.bf16.mxu0 0
  %333 = vmatpush2.bf16.msra.mxu0 0
  %334 = vmatprep.subr.bf16.mxu0 0
  %335 = vmatpush2.bf16.msra.mxu0 0
  %336 = vmatprep.subr.bf16.mxu0 0
  %337 = vmatpush2.bf16.msra.mxu0 0
  %338 = vmatprep.subr.bf16.mxu0 %v222
  %339 = vmatpush2.bf16.msra.mxu0 %v221
  %340 = vmatprep.subr.bf16.mxu0 %v218
  %341 = vmatpush2.bf16.msra.mxu0 %v217
  %342 = vmatprep.mubr.bf16.mxu0 %v265
  %343 = vmatmul.mubr.bf16.gmra.mxu0 %v60
  %v344 = vpop.f32.mrf.mxu0
  %v345 = vadd.f32 0.0, %v344
  %v346 = vpop.f32.mrf.mxu0
  %v347 = vadd.f32 0.0, %v346
  %v348 = vpop.f32.mrf.mxu0
  %v349 = vadd.f32 0.0, %v348
  %v350 = vpop.f32.mrf.mxu0
  %v351 = vadd.f32 0.0, %v350
  %352 = vdwg.mxu0
  %v353 = vmax.f32 %v302, 0.0
  %v354 = vmax.f32 %v304, 0.0
  %v355 = vmax.f32 %v345, 0.0
  %v356 = vmax.f32 %v347, 0.0
  %v357 = vmax.f32 %v306, 0.0
  %v358 = vmax.f32 %v308, 0.0
  %v359 = vmax.f32 %v349, 0.0
  %v360 = vmax.f32 %v351, 0.0
  %v361 = vpack.c.bf16 %v357, %v353
  %v362 = vpack.c.bf16 %v358, %v354
  %v363 = vpack.c.bf16 %v359, %v355
  %v364 = vpack.c.bf16 %v360, %v356
  %v369 = vunpack.c.l.b16 %v361
  %v370 = vunpack.c.l.b16 %v362
  %v371 = vunpack.c.l.b16 %v363
  %v372 = vunpack.c.l.b16 %v364
  %v373 = vunpack.c.h.b16 %v361
  %v374 = vunpack.c.h.b16 %v362
  %v375 = vunpack.c.h.b16 %v363
  %v376 = vunpack.c.h.b16 %v364
  %v377 = vpack.c.b16 %v370, %v369
  %v378 = vpack.c.b16 %v372, %v371
  %v379 = vpack.c.b16 %v374, %v373
  %v380 = vpack.c.b16 %v376, %v375
  %385 = vst [vmem:[%s2] sm:$0xff] %v377
  %386 = vst [vmem:[%s2 + $0x8] sm:$0xff] %v378
  %387 = vst [vmem:[%s2 + $0x10] sm:$0xff] %v379
  %388 = vst [vmem:[%s2 + $0x18] sm:$0xff] %v380
  // Predicated region
  $region10: #{_lambda_.18} parent=0 // pred_check
    _
  $region11: #{_lambda_.18} parent=0 // pred_check_branch
    %390 = sbr.rel (0) target = $region13
  $region12: #{_lambda_.18} parent=0 // pred_region
    _
  $region13: #{_lambda_.18} parent=0 // pred_fallthru
    _
  // Predicated region
  $region14: #{_lambda_.18} parent=0 // pred_check
    _
  $region15: #{_lambda_.18} parent=0 // pred_check_branch
    %392 = sbr.rel (0) target = $region17
  $region16: #{_lambda_.18} parent=0 // pred_region
    _
  $region17: #{_lambda_.18} parent=0 // pred_fallthru
    _

// kernel: _lambda_.19
$region0: #{_lambda_.19}
  #allocation0 [shape = 'u32[]', space=smem, size = 0x4, offset = 0x4, fixed_abs, tag = 'smem constant byte address 0x4 - core index']
  #allocation1 [shape = 'u32[144,128]{1,0:T(1,128)}', space=vmem, size = 0x12000, scoped, tag = 'internal scratch']
  %s0 = inlined_call_operand.vmem [shape: bf16[16,16], index: 0, kind: input, shape index: {}]
  %s1 = inlined_call_operand.vmem [shape: bf16[16,512], index: 1, kind: input, shape index: {}]
  %s2 = inlined_call_operand.vmem [shape: bf16[16,512], index: 2, kind: output, shape index: {}]
  %s3 = sld [smem:[#allocation0]]
  $region18: #{_lambda_.19} parent=0
    _
  %s5 = ssub.s32 1, %s3
  %s6 = scalar_select 0, %s5, %s3
  // Predicated region
  $region2: #{_lambda_.19} parent=0 // pred_check
    _
  $region3: #{_lambda_.19} parent=0 // pred_check_branch
    %8 = sbr.rel (0) target = $region5
  $region4: #{_lambda_.19} parent=0 // pred_region
    _
  $region5: #{_lambda_.19} parent=0 // pred_fallthru
    _
  // Predicated region
  $region6: #{_lambda_.19} parent=0 // pred_check
    _
  $region7: #{_lambda_.19} parent=0 // pred_check_branch
    %10 = sbr.rel (0) target = $region9
  $region8: #{_lambda_.19} parent=0 // pred_region
    _
  $region9: #{_lambda_.19} parent=0 // pred_fallthru
    _
  %v12 = vld [vmem:[%s0] sm:$0xf]
  %v13 = vld [vmem:[%s0 + $0x4] sm:$0xf]
  %v14 = vld [vmem:[%s1] sm:$0xff]
  %v15 = vld [vmem:[%s1 + $0x8] sm:$0xff]
  %v16 = vld [vmem:[%s1 + $0x10] sm:$0xff]
  %v17 = vld [vmem:[%s1 + $0x18] sm:$0xff]
  %v20 = vunpack.c.l.b16 %v12
  %v21 = vunpack.c.l.b16 %v13
  %v22 = vpack.c.b16 %v21, %v20
  %v27 = vunpack.c.l.b16 %v14
  %v28 = vunpack.c.h.b16 %v14
  %v29 = vunpack.c.l.b16 %v15
  %v30 = vunpack.c.h.b16 %v15
  %v31 = vunpack.c.l.b16 %v16
  %v32 = vunpack.c.h.b16 %v16
  %v33 = vunpack.c.l.b16 %v17
  %v34 = vunpack.c.h.b16 %v17
  %v35 = vpack.c.b16 %v31, %v27
  %v36 = vpack.c.b16 %v32, %v28
  %v37 = vpack.c.b16 %v33, %v29
  %v38 = vpack.c.b16 %v34, %v30
  %vm43 = vcmask 130048
  %v45 = vsel %vm43, %v22, 0
  %47 = vmatprep.subr.bf16.mxu0 0
  %48 = vmatpush1.bf16.msra.mxu0 0
  %49 = vmatprep.subr.bf16.mxu0 0
  %50 = vmatpush1.bf16.msra.mxu0 0
  %51 = vmatprep.subr.bf16.mxu0 0
  %52 = vmatpush1.bf16.msra.mxu0 0
  %53 = vmatprep.subr.bf16.mxu0 0
  %54 = vmatpush1.bf16.msra.mxu0 0
  %55 = vmatprep.subr.bf16.mxu0 0
  %56 = vmatpush1.bf16.msra.mxu0 0
  %57 = vmatprep.subr.bf16.mxu0 0
  %58 = vmatpush1.bf16.msra.mxu0 0
  %59 = vmatprep.subr.bf16.mxu0 0
  %60 = vmatpush1.bf16.msra.mxu0 0
  %61 = vmatprep.subr.bf16.mxu0 %v36
  %62 = vmatpush1.bf16.msra.mxu0 %v35
  %63 = vmatprep.subr.bf16.mxu0 0
  %64 = vmatpush2.bf16.msra.mxu0 0
  %65 = vmatprep.subr.bf16.mxu0 0
  %66 = vmatpush2.bf16.msra.mxu0 0
  %67 = vmatprep.subr.bf16.mxu0 0
  %68 = vmatpush2.bf16.msra.mxu0 0
  %69 = vmatprep.subr.bf16.mxu0 0
  %70 = vmatpush2.bf16.msra.mxu0 0
  %71 = vmatprep.subr.bf16.mxu0 0
  %72 = vmatpush2.bf16.msra.mxu0 0
  %73 = vmatprep.subr.bf16.mxu0 0
  %74 = vmatpush2.bf16.msra.mxu0 0
  %75 = vmatprep.subr.bf16.mxu0 0
  %76 = vmatpush2.bf16.msra.mxu0 0
  %77 = vmatprep.subr.bf16.mxu0 0
  %78 = vmatpush2.bf16.msra.mxu0 0
  %79 = vmatprep.mubr.bf16.mxu0 0
  %80 = vmatmul.mubr.bf16.gmra.mxu0 %v45
  %v81 = vpop.f32.mrf.mxu0
  %v82 = vadd.f32 0.0, %v81
  %v83 = vpop.f32.mrf.mxu0
  %v84 = vadd.f32 0.0, %v83
  %v85 = vpop.f32.mrf.mxu0
  %v86 = vadd.f32 0.0, %v85
  %v87 = vpop.f32.mrf.mxu0
  %v88 = vadd.f32 0.0, %v87
  %89 = vdwg.mxu0
  %90 = vmatprep.subr.bf16.mxu0 0
  %91 = vmatpush1.bf16.msra.mxu0 0
  %92 = vmatprep.subr.bf16.mxu0 0
  %93 = vmatpush1.bf16.msra.mxu0 0
  %94 = vmatprep.subr.bf16.mxu0 0
  %95 = vmatpush1.bf16.msra.mxu0 0
  %96 = vmatprep.subr.bf16.mxu0 0
  %97 = vmatpush1.bf16.msra.mxu0 0
  %98 = vmatprep.subr.bf16.mxu0 0
  %99 = vmatpush1.bf16.msra.mxu0 0
  %100 = vmatprep.subr.bf16.mxu0 0
  %101 = vmatpush1.bf16.msra.mxu0 0
  %102 = vmatprep.subr.bf16.mxu0 0
  %103 = vmatpush1.bf16.msra.mxu0 0
  %104 = vmatprep.subr.bf16.mxu0 %v38
  %105 = vmatpush1.bf16.msra.mxu0 %v37
  %106 = vmatprep.subr.bf16.mxu0 0
  %107 = vmatpush2.bf16.msra.mxu0 0
  %108 = vmatprep.subr.bf16.mxu0 0
  %109 = vmatpush2.bf16.msra.mxu0 0
  %110 = vmatprep.subr.bf16.mxu0 0
  %111 = vmatpush2.bf16.msra.mxu0 0
  %112 = vmatprep.subr.bf16.mxu0 0
  %113 = vmatpush2.bf16.msra.mxu0 0
  %114 = vmatprep.subr.bf16.mxu0 0
  %115 = vmatpush2.bf16.msra.mxu0 0
  %116 = vmatprep.subr.bf16.mxu0 0
  %117 = vmatpush2.bf16.msra.mxu0 0
  %118 = vmatprep.subr.bf16.mxu0 0
  %119 = vmatpush2.bf16.msra.mxu0 0
  %120 = vmatprep.subr.bf16.mxu0 0
  %121 = vmatpush2.bf16.msra.mxu0 0
  %122 = vmatprep.mubr.bf16.mxu0 0
  %123 = vmatmul.mubr.bf16.gmra.mxu0 %v45
  %v124 = vpop.f32.mrf.mxu0
  %v125 = vadd.f32 0.0, %v124
  %v126 = vpop.f32.mrf.mxu0
  %v127 = vadd.f32 0.0, %v126
  %v128 = vpop.f32.mrf.mxu0
  %v129 = vadd.f32 0.0, %v128
  %v130 = vpop.f32.mrf.mxu0
  %v131 = vadd.f32 0.0, %v130
  %132 = vdwg.mxu0
  %v133 = vmax.f32 %v82, 0.0
  %v134 = vmax.f32 %v84, 0.0
  %v135 = vmax.f32 %v125, 0.0
  %v136 = vmax.f32 %v127, 0.0
  %v137 = vmax.f32 %v86, 0.0
  %v138 = vmax.f32 %v88, 0.0
  %v139 = vmax.f32 %v129, 0.0
  %v140 = vmax.f32 %v131, 0.0
  %v141 = vpack.c.bf16 %v137, %v133
  %v142 = vpack.c.bf16 %v138, %v134
  %v143 = vpack.c.bf16 %v139, %v135
  %v144 = vpack.c.bf16 %v140, %v136
  %v149 = vunpack.c.l.b16 %v141
  %v150 = vunpack.c.l.b16 %v142
  %v151 = vunpack.c.l.b16 %v143
  %v152 = vunpack.c.l.b16 %v144
  %v153 = vunpack.c.h.b16 %v141
  %v154 = vunpack.c.h.b16 %v142
  %v155 = vunpack.c.h.b16 %v143
  %v156 = vunpack.c.h.b16 %v144
  %v157 = vpack.c.b16 %v150, %v149
  %v158 = vpack.c.b16 %v152, %v151
  %v159 = vpack.c.b16 %v154, %v153
  %v160 = vpack.c.b16 %v156, %v155
  %165 = vst [vmem:[%s2] sm:$0xff] %v157
  %166 = vst [vmem:[%s2 + $0x8] sm:$0xff] %v158
  %167 = vst [vmem:[%s2 + $0x10] sm:$0xff] %v159
  %168 = vst [vmem:[%s2 + $0x18] sm:$0xff] %v160
  // Predicated region
  $region10: #{_lambda_.19} parent=0 // pred_check
    _
  $region11: #{_lambda_.19} parent=0 // pred_check_branch
    %170 = sbr.rel (0) target = $region13
  $region12: #{_lambda_.19} parent=0 // pred_region
    _
  $region13: #{_lambda_.19} parent=0 // pred_fallthru
    _
  // Predicated region
  $region14: #{_lambda_.19} parent=0 // pred_check
    _
  $region15: #{_lambda_.19} parent=0 // pred_check_branch
    %172 = sbr.rel (0) target = $region17
  $region16: #{_lambda_.19} parent=0 // pred_region
    _
  $region17: #{_lambda_.19} parent=0 // pred_fallthru
    _

// kernel: _lambda_.21
$region0: #{_lambda_.21}
  #allocation0 [shape = 'u32[]', space=smem, size = 0x4, offset = 0x4, fixed_abs, tag = 'smem constant byte address 0x4 - core index']
  #allocation1 [shape = 'u32[144,128]{1,0:T(1,128)}', space=vmem, size = 0x12000, scoped, tag = 'internal scratch']
  %s0 = inlined_call_operand.vmem [shape: bf16[16,16], index: 0, kind: input, shape index: {}]
  %s1 = inlined_call_operand.vmem [shape: bf16[16,128], index: 1, kind: input, shape index: {}]
  %s2 = inlined_call_operand.vmem [shape: bf16[16,128], index: 2, kind: output, shape index: {}]
  %s3 = sld [smem:[#allocation0]]
  $region18: #{_lambda_.21} parent=0
    _
  %s5 = ssub.s32 1, %s3
  %s6 = scalar_select 0, %s5, %s3
  // Predicated region
  $region2: #{_lambda_.21} parent=0 // pred_check
    _
  $region3: #{_lambda_.21} parent=0 // pred_check_branch
    %8 = sbr.rel (0) target = $region5
  $region4: #{_lambda_.21} parent=0 // pred_region
    _
  $region5: #{_lambda_.21} parent=0 // pred_fallthru
    _
  // Predicated region
  $region6: #{_lambda_.21} parent=0 // pred_check
    _
  $region7: #{_lambda_.21} parent=0 // pred_check_branch
    %10 = sbr.rel (0) target = $region9
  $region8: #{_lambda_.21} parent=0 // pred_region
    _
  $region9: #{_lambda_.21} parent=0 // pred_fallthru
    _
  %v12 = vld [vmem:[%s0] sm:$0xf]
  %v13 = vld [vmem:[%s0 + $0x4] sm:$0xf]
  %v14 = vld [vmem:[%s1] sm:$0xf]
  %v15 = vld [vmem:[%s1 + $0x4] sm:$0xf]
  %v18 = vunpack.c.l.b16 %v12
  %v19 = vunpack.c.l.b16 %v13
  %v20 = vpack.c.b16 %v19, %v18
  %v23 = vunpack.c.l.b16 %v14
  %v24 = vunpack.c.l.b16 %v15
  %v25 = vpack.c.b16 %v24, %v23
  %vm27 = vcmask 130048
  %v29 = vsel %vm27, %v20, 0
  %31 = vmatprep.subr.bf16.mxu0 0
  %32 = vmatpush1.bf16.msra.mxu0 0
  %33 = vmatprep.subr.bf16.mxu0 0
  %34 = vmatpush1.bf16.msra.mxu0 0
  %35 = vmatprep.subr.bf16.mxu0 0
  %36 = vmatpush1.bf16.msra.mxu0 0
  %37 = vmatprep.subr.bf16.mxu0 0
  %38 = vmatpush1.bf16.msra.mxu0 0
  %39 = vmatprep.subr.bf16.mxu0 0
  %40 = vmatpush1.bf16.msra.mxu0 0
  %41 = vmatprep.subr.bf16.mxu0 0
  %42 = vmatpush1.bf16.msra.mxu0 0
  %43 = vmatprep.subr.bf16.mxu0 0
  %44 = vmatpush1.bf16.msra.mxu0 0
  %45 = vmatprep.subr.bf16.mxu0 0
  %46 = vmatpush1.bf16.msra.mxu0 %v25
  %47 = vmatprep.subr.bf16.mxu0 0
  %48 = vmatpush2.bf16.msra.mxu0 0
  %49 = vmatprep.subr.bf16.mxu0 0
  %50 = vmatpush2.bf16.msra.mxu0 0
  %51 = vmatprep.subr.bf16.mxu0 0
  %52 = vmatpush2.bf16.msra.mxu0 0
  %53 = vmatprep.subr.bf16.mxu0 0
  %54 = vmatpush2.bf16.msra.mxu0 0
  %55 = vmatprep.subr.bf16.mxu0 0
  %56 = vmatpush2.bf16.msra.mxu0 0
  %57 = vmatprep.subr.bf16.mxu0 0
  %58 = vmatpush2.bf16.msra.mxu0 0
  %59 = vmatprep.subr.bf16.mxu0 0
  %60 = vmatpush2.bf16.msra.mxu0 0
  %61 = vmatprep.subr.bf16.mxu0 0
  %62 = vmatpush2.bf16.msra.mxu0 0
  %63 = vmatprep.mubr.bf16.mxu0 0
  %64 = vmatmul.mubr.bf16.gmra.mxu0 %v29
  %v65 = vpop.f32.mrf.mxu0
  %v66 = vadd.f32 0.0, %v65
  %v67 = vpop.f32.mrf.mxu0
  %v68 = vpop.f32.mrf.mxu0
  %v69 = vadd.f32 0.0, %v68
  %v70 = vpop.f32.mrf.mxu0
  %71 = vdwg.mxu0
  %v72 = vmax.f32 %v66, 0.0
  %v73 = vmax.f32 %v69, 0.0
  %v74 = vpack.c.bf16 %v73, %v72
  %v76 = vunpack.c.l.b16 %v74
  %v77 = vunpack.c.h.b16 %v74
  %v78 = vpack.c.b16 %v76, %v76
  %v79 = vpack.c.b16 %v77, %v77
  %82 = vst [vmem:[%s2] sm:$0xf] %v78
  %83 = vst [vmem:[%s2 + $0x4] sm:$0xf] %v79
  // Predicated region
  $region10: #{_lambda_.21} parent=0 // pred_check
    _
  $region11: #{_lambda_.21} parent=0 // pred_check_branch
    %85 = sbr.rel (0) target = $region13
  $region12: #{_lambda_.21} parent=0 // pred_region
    _
  $region13: #{_lambda_.21} parent=0 // pred_fallthru
    _
  // Predicated region
  $region14: #{_lambda_.21} parent=0 // pred_check
    _
  $region15: #{_lambda_.21} parent=0 // pred_check_branch
    %87 = sbr.rel (0) target = $region17
  $region16: #{_lambda_.21} parent=0 // pred_region
    _
  $region17: #{_lambda_.21} parent=0 // pred_fallthru
    _

// kernel: _lambda_.22
$region0: #{_lambda_.22}
  #allocation0 [shape = 'u32[]', space=smem, size = 0x4, offset = 0x4, fixed_abs, tag = 'smem constant byte address 0x4 - core index']
  #allocation1 [shape = 'u32[144,128]{1,0:T(1,128)}', space=vmem, size = 0x12000, scoped, tag = 'internal scratch']
  %s0 = inlined_call_operand.vmem [shape: bf16[16,592], index: 0, kind: input, shape index: {}]
  %s1 = inlined_call_operand.vmem [shape: bf16[592,128], index: 1, kind: input, shape index: {}]
  %s2 = inlined_call_operand.vmem [shape: bf16[16,128], index: 2, kind: output, shape index: {}]
  %s3 = sld [smem:[#allocation0]]
  $region18: #{_lambda_.22} parent=0
    _
  %s5 = ssub.s32 1, %s3
  %s6 = scalar_select 0, %s5, %s3
  // Predicated region
  $region2: #{_lambda_.22} parent=0 // pred_check
    _
  $region3: #{_lambda_.22} parent=0 // pred_check_branch
    %8 = sbr.rel (0) target = $region5
  $region4: #{_lambda_.22} parent=0 // pred_region
    _
  $region5: #{_lambda_.22} parent=0 // pred_fallthru
    _
  // Predicated region
  $region6: #{_lambda_.22} parent=0 // pred_check
    _
  $region7: #{_lambda_.22} parent=0 // pred_check_branch
    %10 = sbr.rel (0) target = $region9
  $region8: #{_lambda_.22} parent=0 // pred_region
    _
  $region9: #{_lambda_.22} parent=0 // pred_fallthru
    _
  %v12 = vld [vmem:[%s0] sm:$0xff]
  %v13 = vld [vmem:[%s0 + $0x8] sm:$0xff]
  %v14 = vld [vmem:[%s0 + $0x10] sm:$0xf]
  %v15 = vld [vmem:[%s0 + $0x14] sm:$0xff]
  %v16 = vld [vmem:[%s0 + $0x1c] sm:$0xff]
  %v17 = vld [vmem:[%s0 + $0x24] sm:$0xf]
  %v18 = vld [vmem:[%s1] sm:$0xf]
  %v19 = vld [vmem:[%s1 + $0x4] sm:$0xf]
  %v20 = vld [vmem:[%s1 + $0x8] sm:$0xf]
  %v21 = vld [vmem:[%s1 + $0xc] sm:$0xf]
  %v22 = vld [vmem:[%s1 + $0x10] sm:$0xf]
  %v23 = vld [vmem:[%s1 + $0x14] sm:$0xf]
  %v24 = vld [vmem:[%s1 + $0x18] sm:$0xf]
  %v25 = vld [vmem:[%s1 + $0x1c] sm:$0xf]
  %v26 = vld [vmem:[%s1 + $0x20] sm:$0xf]
  %v27 = vld [vmem:[%s1 + $0x24] sm:$0xf]
  %v28 = vld [vmem:[%s1 + $0x28] sm:$0xf]
  %v29 = vld [vmem:[%s1 + $0x2c] sm:$0xf]
  %v30 = vld [vmem:[%s1 + $0x30] sm:$0xf]
  %v31 = vld [vmem:[%s1 + $0x34] sm:$0xf]
  %v32 = vld [vmem:[%s1 + $0x38] sm:$0xf]
  %v33 = vld [vmem:[%s1 + $0x3c] sm:$0xf]
  %v34 = vld [vmem:[%s1 + $0x40] sm:$0xf]
  %v35 = vld [vmem:[%s1 + $0x44] sm:$0xf]
  %v36 = vld [vmem:[%s1 + $0x48] sm:$0xf]
  %v37 = vld [vmem:[%s1 + $0x4c] sm:$0xf]
  %v38 = vld [vmem:[%s1 + $0x50] sm:$0xf]
  %v39 = vld [vmem:[%s1 + $0x54] sm:$0xf]
  %v40 = vld [vmem:[%s1 + $0x58] sm:$0xf]
  %v41 = vld [vmem:[%s1 + $0x5c] sm:$0xf]
  %v42 = vld [vmem:[%s1 + $0x60] sm:$0xf]
  %v43 = vld [vmem:[%s1 + $0x64] sm:$0xf]
  %v44 = vld [vmem:[%s1 + $0x68] sm:$0xf]
  %v45 = vld [vmem:[%s1 + $0x6c] sm:$0xf]
  %v46 = vld [vmem:[%s1 + $0x70] sm:$0xf]
  %v47 = vld [vmem:[%s1 + $0x74] sm:$0xf]
  %v48 = vld [vmem:[%s1 + $0x78] sm:$0xf]
  %v49 = vld [vmem:[%s1 + $0x7c] sm:$0xf]
  %v50 = vld [vmem:[%s1 + $0x80] sm:$0xf]
  %v51 = vld [vmem:[%s1 + $0x84] sm:$0xf]
  %v52 = vld [vmem:[%s1 + $0x88] sm:$0xf]
  %v53 = vld [vmem:[%s1 + $0x8c] sm:$0xf]
  %v54 = vld [vmem:[%s1 + $0x90] sm:$0xf]
  %v55 = vld [vmem:[%s1 + $0x94] sm:$0xf]
  %v56 = vld [vmem:[%s1 + $0x98] sm:$0xf]
  %v57 = vld [vmem:[%s1 + $0x9c] sm:$0xf]
  %v58 = vld [vmem:[%s1 + $0xa0] sm:$0xf]
  %v59 = vld [vmem:[%s1 + $0xa4] sm:$0xf]
  %v60 = vld [vmem:[%s1 + $0xa8] sm:$0xf]
  %v61 = vld [vmem:[%s1 + $0xac] sm:$0xf]
  %v62 = vld [vmem:[%s1 + $0xb0] sm:$0xf]
  %v63 = vld [vmem:[%s1 + $0xb4] sm:$0xf]
  %v64 = vld [vmem:[%s1 + $0xb8] sm:$0xf]
  %v65 = vld [vmem:[%s1 + $0xbc] sm:$0xf]
  %v66 = vld [vmem:[%s1 + $0xc0] sm:$0xf]
  %v67 = vld [vmem:[%s1 + $0xc4] sm:$0xf]
  %v68 = vld [vmem:[%s1 + $0xc8] sm:$0xf]
  %v69 = vld [vmem:[%s1 + $0xcc] sm:$0xf]
  %v70 = vld [vmem:[%s1 + $0xd0] sm:$0xf]
  %v71 = vld [vmem:[%s1 + $0xd4] sm:$0xf]
  %v72 = vld [vmem:[%s1 + $0xd8] sm:$0xf]
  %v73 = vld [vmem:[%s1 + $0xdc] sm:$0xf]
  %v74 = vld [vmem:[%s1 + $0xe0] sm:$0xf]
  %v75 = vld [vmem:[%s1 + $0xe4] sm:$0xf]
  %v76 = vld [vmem:[%s1 + $0xe8] sm:$0xf]
  %v77 = vld [vmem:[%s1 + $0xec] sm:$0xf]
  %v78 = vld [vmem:[%s1 + $0xf0] sm:$0xf]
  %v79 = vld [vmem:[%s1 + $0xf4] sm:$0xf]
  %v80 = vld [vmem:[%s1 + $0xf8] sm:$0xf]
  %v81 = vld [vmem:[%s1 + $0xfc] sm:$0xf]
  %v82 = vld [vmem:[%s1 + $0x100] sm:$0xf]
  %v83 = vld [vmem:[%s1 + $0x104] sm:$0xf]
  %v84 = vld [vmem:[%s1 + $0x108] sm:$0xf]
  %v85 = vld [vmem:[%s1 + $0x10c] sm:$0xf]
  %v86 = vld [vmem:[%s1 + $0x110] sm:$0xf]
  %v87 = vld [vmem:[%s1 + $0x114] sm:$0xf]
  %v88 = vld [vmem:[%s1 + $0x118] sm:$0xf]
  %v89 = vld [vmem:[%s1 + $0x11c] sm:$0xf]
  %v90 = vld [vmem:[%s1 + $0x120] sm:$0xf]
  %v91 = vld [vmem:[%s1 + $0x124] sm:$0xf]
  %v98 = vunpack.c.l.b16 %v12
  %v99 = vunpack.c.h.b16 %v12
  %v100 = vunpack.c.l.b16 %v13
  %v101 = vunpack.c.h.b16 %v13
  %v102 = vunpack.c.l.b16 %v14
  %v103 = vunpack.c.l.b16 %v15
  %v104 = vunpack.c.h.b16 %v15
  %v105 = vunpack.c.l.b16 %v16
  %v106 = vunpack.c.h.b16 %v16
  %v107 = vunpack.c.l.b16 %v17
  %v108 = vpack.c.b16 %v103, %v98
  %v109 = vpack.c.b16 %v104, %v99
  %v110 = vpack.c.b16 %v105, %v100
  %v111 = vpack.c.b16 %v106, %v101
  %v112 = vpack.c.b16 %v107, %v102
  %v191 = vunpack.c.l.b16 %v18
  %v192 = vunpack.c.l.b16 %v19
  %v193 = vunpack.c.l.b16 %v20
  %v194 = vunpack.c.l.b16 %v21
  %v195 = vunpack.c.l.b16 %v22
  %v196 = vunpack.c.l.b16 %v23
  %v197 = vunpack.c.l.b16 %v24
  %v198 = vunpack.c.l.b16 %v25
  %v199 = vunpack.c.l.b16 %v26
  %v200 = vunpack.c.l.b16 %v27
  %v201 = vunpack.c.l.b16 %v28
  %v202 = vunpack.c.l.b16 %v29
  %v203 = vunpack.c.l.b16 %v30
  %v204 = vunpack.c.l.b16 %v31
  %v205 = vunpack.c.l.b16 %v32
  %v206 = vunpack.c.l.b16 %v33
  %v207 = vunpack.c.l.b16 %v34
  %v208 = vunpack.c.l.b16 %v35
  %v209 = vunpack.c.l.b16 %v36
  %v210 = vunpack.c.l.b16 %v37
  %v211 = vunpack.c.l.b16 %v38
  %v212 = vunpack.c.l.b16 %v39
  %v213 = vunpack.c.l.b16 %v40
  %v214 = vunpack.c.l.b16 %v41
  %v215 = vunpack.c.l.b16 %v42
  %v216 = vunpack.c.l.b16 %v43
  %v217 = vunpack.c.l.b16 %v44
  %v218 = vunpack.c.l.b16 %v45
  %v219 = vunpack.c.l.b16 %v46
  %v220 = vunpack.c.l.b16 %v47
  %v221 = vunpack.c.l.b16 %v48
  %v222 = vunpack.c.l.b16 %v49
  %v223 = vunpack.c.l.b16 %v50
  %v224 = vunpack.c.l.b16 %v51
  %v225 = vunpack.c.l.b16 %v52
  %v226 = vunpack.c.l.b16 %v53
  %v227 = vunpack.c.l.b16 %v54
  %v228 = vunpack.c.l.b16 %v55
  %v229 = vunpack.c.l.b16 %v56
  %v230 = vunpack.c.l.b16 %v57
  %v231 = vunpack.c.l.b16 %v58
  %v232 = vunpack.c.l.b16 %v59
  %v233 = vunpack.c.l.b16 %v60
  %v234 = vunpack.c.l.b16 %v61
  %v235 = vunpack.c.l.b16 %v62
  %v236 = vunpack.c.l.b16 %v63
  %v237 = vunpack.c.l.b16 %v64
  %v238 = vunpack.c.l.b16 %v65
  %v239 = vunpack.c.l.b16 %v66
  %v240 = vunpack.c.l.b16 %v67
  %v241 = vunpack.c.l.b16 %v68
  %v242 = vunpack.c.l.b16 %v69
  %v243 = vunpack.c.l.b16 %v70
  %v244 = vunpack.c.l.b16 %v71
  %v245 = vunpack.c.l.b16 %v72
  %v246 = vunpack.c.l.b16 %v73
  %v247 = vunpack.c.l.b16 %v74
  %v248 = vunpack.c.l.b16 %v75
  %v249 = vunpack.c.l.b16 %v76
  %v250 = vunpack.c.l.b16 %v77
  %v251 = vunpack.c.l.b16 %v78
  %v252 = vunpack.c.l.b16 %v79
  %v253 = vunpack.c.l.b16 %v80
  %v254 = vunpack.c.l.b16 %v81
  %v255 = vunpack.c.l.b16 %v82
  %v256 = vunpack.c.l.b16 %v83
  %v257 = vunpack.c.l.b16 %v84
  %v258 = vunpack.c.l.b16 %v85
  %v259 = vunpack.c.l.b16 %v86
  %v260 = vunpack.c.l.b16 %v87
  %v261 = vunpack.c.l.b16 %v88
  %v262 = vunpack.c.l.b16 %v89
  %v263 = vunpack.c.l.b16 %v90
  %v264 = vunpack.c.l.b16 %v91
  %v265 = vpack.c.b16 %v192, %v191
  %v266 = vpack.c.b16 %v194, %v193
  %v267 = vpack.c.b16 %v196, %v195
  %v268 = vpack.c.b16 %v198, %v197
  %v269 = vpack.c.b16 %v200, %v199
  %v270 = vpack.c.b16 %v202, %v201
  %v271 = vpack.c.b16 %v204, %v203
  %v272 = vpack.c.b16 %v206, %v205
  %v273 = vpack.c.b16 %v208, %v207
  %v274 = vpack.c.b16 %v210, %v209
  %v275 = vpack.c.b16 %v212, %v211
  %v276 = vpack.c.b16 %v214, %v213
  %v277 = vpack.c.b16 %v216, %v215
  %v278 = vpack.c.b16 %v218, %v217
  %v279 = vpack.c.b16 %v220, %v219
  %v280 = vpack.c.b16 %v222, %v221
  %v281 = vpack.c.b16 %v224, %v223
  %v282 = vpack.c.b16 %v226, %v225
  %v283 = vpack.c.b16 %v228, %v227
  %v284 = vpack.c.b16 %v230, %v229
  %v285 = vpack.c.b16 %v232, %v231
  %v286 = vpack.c.b16 %v234, %v233
  %v287 = vpack.c.b16 %v236, %v235
  %v288 = vpack.c.b16 %v238, %v237
  %v289 = vpack.c.b16 %v240, %v239
  %v290 = vpack.c.b16 %v242, %v241
  %v291 = vpack.c.b16 %v244, %v243
  %v292 = vpack.c.b16 %v246, %v245
  %v293 = vpack.c.b16 %v248, %v247
  %v294 = vpack.c.b16 %v250, %v249
  %v295 = vpack.c.b16 %v252, %v251
  %v296 = vpack.c.b16 %v254, %v253
  %v297 = vpack.c.b16 %v256, %v255
  %v298 = vpack.c.b16 %v258, %v257
  %v299 = vpack.c.b16 %v260, %v259
  %v300 = vpack.c.b16 %v262, %v261
  %v301 = vpack.c.b16 %v264, %v263
  %vm339 = vcmask 654336
  %v341 = vsel %vm339, %v112, 0
  %343 = vmatprep.subr.bf16.mxu0 0
  %344 = vmatpush1.bf16.msra.mxu0 %v272
  %345 = vmatprep.subr.bf16.mxu0 0
  %346 = vmatpush1.bf16.msra.mxu0 %v271
  %347 = vmatprep.subr.bf16.mxu0 0
  %348 = vmatpush1.bf16.msra.mxu0 %v270
  %349 = vmatprep.subr.bf16.mxu0 0
  %350 = vmatpush1.bf16.msra.mxu0 %v269
  %351 = vmatprep.subr.bf16.mxu0 0
  %352 = vmatpush1.bf16.msra.mxu0 %v268
  %353 = vmatprep.subr.bf16.mxu0 0
  %354 = vmatpush1.bf16.msra.mxu0 %v267
  %355 = vmatprep.subr.bf16.mxu0 0
  %356 = vmatpush1.bf16.msra.mxu0 %v266
  %357 = vmatprep.subr.bf16.mxu0 0
  %358 = vmatpush1.bf16.msra.mxu0 %v265
  %359 = vmatprep.subr.bf16.mxu0 0
  %360 = vmatpush2.bf16.msra.mxu0 %v280
  %361 = vmatprep.subr.bf16.mxu0 0
  %362 = vmatpush2.bf16.msra.mxu0 %v279
  %363 = vmatprep.subr.bf16.mxu0 0
  %364 = vmatpush2.bf16.msra.mxu0 %v278
  %365 = vmatprep.subr.bf16.mxu0 0
  %366 = vmatpush2.bf16.msra.mxu0 %v277
  %367 = vmatprep.subr.bf16.mxu0 0
  %368 = vmatpush2.bf16.msra.mxu0 %v276
  %369 = vmatprep.subr.bf16.mxu0 0
  %370 = vmatpush2.bf16.msra.mxu0 %v275
  %371 = vmatprep.subr.bf16.mxu0 0
  %372 = vmatpush2.bf16.msra.mxu0 %v274
  %373 = vmatprep.subr.bf16.mxu0 0
  %374 = vmatpush2.bf16.msra.mxu0 %v273
  %375 = vmatprep.mubr.bf16.mxu0 %v109
  %376 = vmatmul.mubr.bf16.gmra.mxu0 %v108
  %v377 = vpop.f32.mrf.mxu0
  %v378 = vadd.f32 0.0, %v377
  %v379 = vpop.f32.mrf.mxu0
  %v380 = vpop.f32.mrf.mxu0
  %v381 = vadd.f32 0.0, %v380
  %v382 = vpop.f32.mrf.mxu0
  %383 = vdwg.mxu0
  %384 = vmatprep.subr.bf16.mxu0 0
  %385 = vmatpush1.bf16.msra.mxu0 %v288
  %386 = vmatprep.subr.bf16.mxu0 0
  %387 = vmatpush1.bf16.msra.mxu0 %v287
  %388 = vmatprep.subr.bf16.mxu0 0
  %389 = vmatpush1.bf16.msra.mxu0 %v286
  %390 = vmatprep.subr.bf16.mxu0 0
  %391 = vmatpush1.bf16.msra.mxu0 %v285
  %392 = vmatprep.subr.bf16.mxu0 0
  %393 = vmatpush1.bf16.msra.mxu0 %v284
  %394 = vmatprep.subr.bf16.mxu0 0
  %395 = vmatpush1.bf16.msra.mxu0 %v283
  %396 = vmatprep.subr.bf16.mxu0 0
  %397 = vmatpush1.bf16.msra.mxu0 %v282
  %398 = vmatprep.subr.bf16.mxu0 0
  %399 = vmatpush1.bf16.msra.mxu0 %v281
  %400 = vmatprep.subr.bf16.mxu0 0
  %401 = vmatpush2.bf16.msra.mxu0 %v296
  %402 = vmatprep.subr.bf16.mxu0 0
  %403 = vmatpush2.bf16.msra.mxu0 %v295
  %404 = vmatprep.subr.bf16.mxu0 0
  %405 = vmatpush2.bf16.msra.mxu0 %v294
  %406 = vmatprep.subr.bf16.mxu0 0
  %407 = vmatpush2.bf16.msra.mxu0 %v293
  %408 = vmatprep.subr.bf16.mxu0 0
  %409 = vmatpush2.bf16.msra.mxu0 %v292
  %410 = vmatprep.subr.bf16.mxu0 0
  %411 = vmatpush2.bf16.msra.mxu0 %v291
  %412 = vmatprep.subr.bf16.mxu0 0
  %413 = vmatpush2.bf16.msra.mxu0 %v290
  %414 = vmatprep.subr.bf16.mxu0 0
  %415 = vmatpush2.bf16.msra.mxu0 %v289
  %416 = vmatprep.mubr.bf16.mxu0 %v111
  %417 = vmatmul.mubr.bf16.gmra.mxu0 %v110
  %v418 = vpop.f32.mrf.mxu0
  %v419 = vadd.f32 %v378, %v418
  %v420 = vpop.f32.mrf.mxu0
  %v421 = vpop.f32.mrf.mxu0
  %v422 = vadd.f32 %v381, %v421
  %v423 = vpop.f32.mrf.mxu0
  %424 = vdwg.mxu0
  %425 = vmatprep.subr.bf16.mxu0 0
  %426 = vmatpush1.bf16.msra.mxu0 0
  %427 = vmatprep.subr.bf16.mxu0 0
  %428 = vmatpush1.bf16.msra.mxu0 0
  %429 = vmatprep.subr.bf16.mxu0 0
  %430 = vmatpush1.bf16.msra.mxu0 0
  %431 = vmatprep.subr.bf16.mxu0 0
  %432 = vmatpush1.bf16.msra.mxu0 %v301
  %433 = vmatprep.subr.bf16.mxu0 0
  %434 = vmatpush1.bf16.msra.mxu0 %v300
  %435 = vmatprep.subr.bf16.mxu0 0
  %436 = vmatpush1.bf16.msra.mxu0 %v299
  %437 = vmatprep.subr.bf16.mxu0 0
  %438 = vmatpush1.bf16.msra.mxu0 %v298
  %439 = vmatprep.subr.bf16.mxu0 0
  %440 = vmatpush1.bf16.msra.mxu0 %v297
  %441 = vmatprep.subr.bf16.mxu0 0
  %442 = vmatpush2.bf16.msra.mxu0 0
  %443 = vmatprep.subr.bf16.mxu0 0
  %444 = vmatpush2.bf16.msra.mxu0 0
  %445 = vmatprep.subr.bf16.mxu0 0
  %446 = vmatpush2.bf16.msra.mxu0 0
  %447 = vmatprep.subr.bf16.mxu0 0
  %448 = vmatpush2.bf16.msra.mxu0 0
  %449 = vmatprep.subr.bf16.mxu0 0
  %450 = vmatpush2.bf16.msra.mxu0 0
  %451 = vmatprep.subr.bf16.mxu0 0
  %452 = vmatpush2.bf16.msra.mxu0 0
  %453 = vmatprep.subr.bf16.mxu0 0
  %454 = vmatpush2.bf16.msra.mxu0 0
  %455 = vmatprep.subr.bf16.mxu0 0
  %456 = vmatpush2.bf16.msra.mxu0 0
  %457 = vmatprep.mubr.bf16.mxu0 0
  %458 = vmatmul.mubr.bf16.gmra.mxu0 %v341
  %v459 = vpop.f32.mrf.mxu0
  %v460 = vadd.f32 %v419, %v459
  %v461 = vpop.f32.mrf.mxu0
  %v462 = vpop.f32.mrf.mxu0
  %v463 = vadd.f32 %v422, %v462
  %v464 = vpop.f32.mrf.mxu0
  %465 = vdwg.mxu0
  %v466 = vmax.f32 %v460, 0.0
  %v467 = vmax.f32 %v463, 0.0
  %v468 = vpack.c.bf16 %v467, %v466
  %v470 = vunpack.c.l.b16 %v468
  %v471 = vunpack.c.h.b16 %v468
  %v472 = vpack.c.b16 %v470, %v470
  %v473 = vpack.c.b16 %v471, %v471
  %476 = vst [vmem:[%s2] sm:$0xf] %v472
  %477 = vst [vmem:[%s2 + $0x4] sm:$0xf] %v473
  // Predicated region
  $region10: #{_lambda_.22} parent=0 // pred_check
    _
  $region11: #{_lambda_.22} parent=0 // pred_check_branch
    %479 = sbr.rel (0) target = $region13
  $region12: #{_lambda_.22} parent=0 // pred_region
    _
  $region13: #{_lambda_.22} parent=0 // pred_fallthru
    _
  // Predicated region
  $region14: #{_lambda_.22} parent=0 // pred_check
    _
  $region15: #{_lambda_.22} parent=0 // pred_check_branch
    %481 = sbr.rel (0) target = $region17
  $region16: #{_lambda_.22} parent=0 // pred_region
    _
  $region17: #{_lambda_.22} parent=0 // pred_fallthru
    _

// kernel: _lambda_.31
$region0: #{_lambda_.31}
  #allocation0 [shape = 'u32[]', space=smem, size = 0x4, offset = 0x4, fixed_abs, tag = 'smem constant byte address 0x4 - core index']
  #allocation1 [shape = 'u32[144,128]{1,0:T(1,128)}', space=vmem, size = 0x12000, scoped, tag = 'internal scratch']
  %s0 = inlined_call_operand.vmem [shape: bf16[16,32], index: 0, kind: input, shape index: {}]
  %s1 = inlined_call_operand.vmem [shape: bf16[32,128], index: 1, kind: input, shape index: {}]
  %s2 = inlined_call_operand.vmem [shape: bf16[16,128], index: 2, kind: output, shape index: {}]
  %s3 = sld [smem:[#allocation0]]
  $region18: #{_lambda_.31} parent=0
    _
  %s5 = ssub.s32 1, %s3
  %s6 = scalar_select 0, %s5, %s3
  // Predicated region
  $region2: #{_lambda_.31} parent=0 // pred_check
    _
  $region3: #{_lambda_.31} parent=0 // pred_check_branch
    %8 = sbr.rel (0) target = $region5
  $region4: #{_lambda_.31} parent=0 // pred_region
    _
  $region5: #{_lambda_.31} parent=0 // pred_fallthru
    _
  // Predicated region
  $region6: #{_lambda_.31} parent=0 // pred_check
    _
  $region7: #{_lambda_.31} parent=0 // pred_check_branch
    %10 = sbr.rel (0) target = $region9
  $region8: #{_lambda_.31} parent=0 // pred_region
    _
  $region9: #{_lambda_.31} parent=0 // pred_fallthru
    _
  %v12 = vld [vmem:[%s0] sm:$0xf]
  %v13 = vld [vmem:[%s0 + $0x4] sm:$0xf]
  %v14 = vld [vmem:[%s1] sm:$0xf]
  %v15 = vld [vmem:[%s1 + $0x4] sm:$0xf]
  %v16 = vld [vmem:[%s1 + $0x8] sm:$0xf]
  %v17 = vld [vmem:[%s1 + $0xc] sm:$0xf]
  %v20 = vunpack.c.l.b16 %v12
  %v21 = vunpack.c.l.b16 %v13
  %v22 = vpack.c.b16 %v21, %v20
  %v27 = vunpack.c.l.b16 %v14
  %v28 = vunpack.c.l.b16 %v15
  %v29 = vunpack.c.l.b16 %v16
  %v30 = vunpack.c.l.b16 %v17
  %v31 = vpack.c.b16 %v28, %v27
  %v32 = vpack.c.b16 %v30, %v29
  %vm35 = vcmask 261120
  %v37 = vsel %vm35, %v22, 0
  %39 = vmatprep.subr.bf16.mxu0 0
  %40 = vmatpush1.bf16.msra.mxu0 0
  %41 = vmatprep.subr.bf16.mxu0 0
  %42 = vmatpush1.bf16.msra.mxu0 0
  %43 = vmatprep.subr.bf16.mxu0 0
  %44 = vmatpush1.bf16.msra.mxu0 0
  %45 = vmatprep.subr.bf16.mxu0 0
  %46 = vmatpush1.bf16.msra.mxu0 0
  %47 = vmatprep.subr.bf16.mxu0 0
  %48 = vmatpush1.bf16.msra.mxu0 0
  %49 = vmatprep.subr.bf16.mxu0 0
  %50 = vmatpush1.bf16.msra.mxu0 0
  %51 = vmatprep.subr.bf16.mxu0 0
  %52 = vmatpush1.bf16.msra.mxu0 %v32
  %53 = vmatprep.subr.bf16.mxu0 0
  %54 = vmatpush1.bf16.msra.mxu0 %v31
  %55 = vmatprep.subr.bf16.mxu0 0
  %56 = vmatpush2.bf16.msra.mxu0 0
  %57 = vmatprep.subr.bf16.mxu0 0
  %58 = vmatpush2.bf16.msra.mxu0 0
  %59 = vmatprep.subr.bf16.mxu0 0
  %60 = vmatpush2.bf16.msra.mxu0 0
  %61 = vmatprep.subr.bf16.mxu0 0
  %62 = vmatpush2.bf16.msra.mxu0 0
  %63 = vmatprep.subr.bf16.mxu0 0
  %64 = vmatpush2.bf16.msra.mxu0 0
  %65 = vmatprep.subr.bf16.mxu0 0
  %66 = vmatpush2.bf16.msra.mxu0 0
  %67 = vmatprep.subr.bf16.mxu0 0
  %68 = vmatpush2.bf16.msra.mxu0 0
  %69 = vmatprep.subr.bf16.mxu0 0
  %70 = vmatpush2.bf16.msra.mxu0 0
  %71 = vmatprep.mubr.bf16.mxu0 0
  %72 = vmatmul.mubr.bf16.gmra.mxu0 %v37
  %v73 = vpop.f32.mrf.mxu0
  %v74 = vadd.f32 0.0, %v73
  %v75 = vpop.f32.mrf.mxu0
  %v76 = vpop.f32.mrf.mxu0
  %v77 = vadd.f32 0.0, %v76
  %v78 = vpop.f32.mrf.mxu0
  %79 = vdwg.mxu0
  %v80 = vmax.f32 %v74, 0.0
  %v81 = vmax.f32 %v77, 0.0
  %v82 = vpack.c.bf16 %v81, %v80
  %v84 = vunpack.c.l.b16 %v82
  %v85 = vunpack.c.h.b16 %v82
  %v86 = vpack.c.b16 %v84, %v84
  %v87 = vpack.c.b16 %v85, %v85
  %90 = vst [vmem:[%s2] sm:$0xf] %v86
  %91 = vst [vmem:[%s2 + $0x4] sm:$0xf] %v87
  // Predicated region
  $region10: #{_lambda_.31} parent=0 // pred_check
    _
  $region11: #{_lambda_.31} parent=0 // pred_check_branch
    %93 = sbr.rel (0) target = $region13
  $region12: #{_lambda_.31} parent=0 // pred_region
    _
  $region13: #{_lambda_.31} parent=0 // pred_fallthru
    _
  // Predicated region
  $region14: #{_lambda_.31} parent=0 // pred_check
    _
  $region15: #{_lambda_.31} parent=0 // pred_check_branch
    %95 = sbr.rel (0) target = $region17
  $region16: #{_lambda_.31} parent=0 // pred_region
    _
  $region17: #{_lambda_.31} parent=0 // pred_fallthru
    _

// kernel: _lambda_.20
$region0: #{_lambda_.20}
  #allocation0 [shape = 'u32[]', space=smem, size = 0x4, offset = 0x4, fixed_abs, tag = 'smem constant byte address 0x4 - core index']
  #allocation1 [shape = 'u32[144,128]{1,0:T(1,128)}', space=vmem, size = 0x12000, scoped, tag = 'internal scratch']
  %s0 = inlined_call_operand.vmem [shape: bf16[16,592], index: 0, kind: input, shape index: {}]
  %s1 = inlined_call_operand.vmem [shape: bf16[592,512], index: 1, kind: input, shape index: {}]
  %s2 = inlined_call_operand.vmem [shape: bf16[16,512], index: 2, kind: output, shape index: {}]
  %s3 = sld [smem:[#allocation0]]
  $region18: #{_lambda_.20} parent=0
    _
  %s5 = ssub.s32 1, %s3
  %s6 = scalar_select 0, %s5, %s3
  // Predicated region
  $region2: #{_lambda_.20} parent=0 // pred_check
    _
  $region3: #{_lambda_.20} parent=0 // pred_check_branch
    %8 = sbr.rel (0) target = $region5
  $region4: #{_lambda_.20} parent=0 // pred_region
    _
  $region5: #{_lambda_.20} parent=0 // pred_fallthru
    _
  // Predicated region
  $region6: #{_lambda_.20} parent=0 // pred_check
    _
  $region7: #{_lambda_.20} parent=0 // pred_check_branch
    %10 = sbr.rel (0) target = $region9
  $region8: #{_lambda_.20} parent=0 // pred_region
    _
  $region9: #{_lambda_.20} parent=0 // pred_fallthru
    _
  %v12 = vld [vmem:[%s0] sm:$0xff]
  %v13 = vld [vmem:[%s0 + $0x8] sm:$0xff]
  %v14 = vld [vmem:[%s0 + $0x10] sm:$0xf]
  %v15 = vld [vmem:[%s0 + $0x14] sm:$0xff]
  %v16 = vld [vmem:[%s0 + $0x1c] sm:$0xff]
  %v17 = vld [vmem:[%s0 + $0x24] sm:$0xf]
  %v18 = vld [vmem:[%s1] sm:$0xff]
  %v19 = vld [vmem:[%s1 + $0x8] sm:$0xff]
  %v20 = vld [vmem:[%s1 + $0x10] sm:$0xff]
  %v21 = vld [vmem:[%s1 + $0x18] sm:$0xff]
  %v22 = vld [vmem:[%s1 + $0x20] sm:$0xff]
  %v23 = vld [vmem:[%s1 + $0x28] sm:$0xff]
  %v24 = vld [vmem:[%s1 + $0x30] sm:$0xff]
  %v25 = vld [vmem:[%s1 + $0x38] sm:$0xff]
  %v26 = vld [vmem:[%s1 + $0x40] sm:$0xff]
  %v27 = vld [vmem:[%s1 + $0x48] sm:$0xff]
  %v28 = vld [vmem:[%s1 + $0x50] sm:$0xff]
  %v29 = vld [vmem:[%s1 + $0x58] sm:$0xff]
  %v30 = vld [vmem:[%s1 + $0x60] sm:$0xff]
  %v31 = vld [vmem:[%s1 + $0x68] sm:$0xff]
  %v32 = vld [vmem:[%s1 + $0x70] sm:$0xff]
  %v33 = vld [vmem:[%s1 + $0x78] sm:$0xff]
  %v34 = vld [vmem:[%s1 + $0x80] sm:$0xff]
  %v35 = vld [vmem:[%s1 + $0x88] sm:$0xff]
  %v36 = vld [vmem:[%s1 + $0x90] sm:$0xff]
  %v37 = vld [vmem:[%s1 + $0x98] sm:$0xff]
  %v38 = vld [vmem:[%s1 + $0xa0] sm:$0xff]
  %v39 = vld [vmem:[%s1 + $0xa8] sm:$0xff]
  %v40 = vld [vmem:[%s1 + $0xb0] sm:$0xff]
  %v41 = vld [vmem:[%s1 + $0xb8] sm:$0xff]
  %v42 = vld [vmem:[%s1 + $0xc0] sm:$0xff]
  %v43 = vld [vmem:[%s1 + $0xc8] sm:$0xff]
  %v44 = vld [vmem:[%s1 + $0xd0] sm:$0xff]
  %v45 = vld [vmem:[%s1 + $0xd8] sm:$0xff]
  %v46 = vld [vmem:[%s1 + $0xe0] sm:$0xff]
  %v47 = vld [vmem:[%s1 + $0xe8] sm:$0xff]
  %v48 = vld [vmem:[%s1 + $0xf0] sm:$0xff]
  %v49 = vld [vmem:[%s1 + $0xf8] sm:$0xff]
  %v50 = vld [vmem:[%s1 + $0x100] sm:$0xff]
  %v51 = vld [vmem:[%s1 + $0x108] sm:$0xff]
  %v52 = vld [vmem:[%s1 + $0x110] sm:$0xff]
  %v53 = vld [vmem:[%s1 + $0x118] sm:$0xff]
  %v54 = vld [vmem:[%s1 + $0x120] sm:$0xff]
  %v55 = vld [vmem:[%s1 + $0x128] sm:$0xff]
  %v56 = vld [vmem:[%s1 + $0x130] sm:$0xff]
  %v57 = vld [vmem:[%s1 + $0x138] sm:$0xff]
  %v58 = vld [vmem:[%s1 + $0x140] sm:$0xff]
  %v59 = vld [vmem:[%s1 + $0x148] sm:$0xff]
  %v60 = vld [vmem:[%s1 + $0x150] sm:$0xff]
  %v61 = vld [vmem:[%s1 + $0x158] sm:$0xff]
  %v62 = vld [vmem:[%s1 + $0x160] sm:$0xff]
  %v63 = vld [vmem:[%s1 + $0x168] sm:$0xff]
  %v64 = vld [vmem:[%s1 + $0x170] sm:$0xff]
  %v65 = vld [vmem:[%s1 + $0x178] sm:$0xff]
  %v66 = vld [vmem:[%s1 + $0x180] sm:$0xff]
  %v67 = vld [vmem:[%s1 + $0x188] sm:$0xff]
  %v68 = vld [vmem:[%s1 + $0x190] sm:$0xff]
  %v69 = vld [vmem:[%s1 + $0x198] sm:$0xff]
  %v70 = vld [vmem:[%s1 + $0x1a0] sm:$0xff]
  %v71 = vld [vmem:[%s1 + $0x1a8] sm:$0xff]
  %v72 = vld [vmem:[%s1 + $0x1b0] sm:$0xff]
  %v73 = vld [vmem:[%s1 + $0x1b8] sm:$0xff]
  %v74 = vld [vmem:[%s1 + $0x1c0] sm:$0xff]
  %v75 = vld [vmem:[%s1 + $0x1c8] sm:$0xff]
  %v76 = vld [vmem:[%s1 + $0x1d0] sm:$0xff]
  %v77 = vld [vmem:[%s1 + $0x1d8] sm:$0xff]
  %v78 = vld [vmem:[%s1 + $0x1e0] sm:$0xff]
  %v79 = vld [vmem:[%s1 + $0x1e8] sm:$0xff]
  %v80 = vld [vmem:[%s1 + $0x1f0] sm:$0xff]
  %v81 = vld [vmem:[%s1 + $0x1f8] sm:$0xff]
  %v82 = vld [vmem:[%s1 + $0x200] sm:$0xff]
  %v83 = vld [vmem:[%s1 + $0x208] sm:$0xff]
  %v84 = vld [vmem:[%s1 + $0x210] sm:$0xff]
  %v85 = vld [vmem:[%s1 + $0x218] sm:$0xff]
  %v86 = vld [vmem:[%s1 + $0x220] sm:$0xff]
  %v87 = vld [vmem:[%s1 + $0x228] sm:$0xff]
  %v88 = vld [vmem:[%s1 + $0x230] sm:$0xff]
  %v89 = vld [vmem:[%s1 + $0x238] sm:$0xff]
  %v90 = vld [vmem:[%s1 + $0x240] sm:$0xff]
  %v91 = vld [vmem:[%s1 + $0x248] sm:$0xff]
  %v92 = vld [vmem:[%s1 + $0x250] sm:$0xff]
  %v93 = vld [vmem:[%s1 + $0x258] sm:$0xff]
  %v94 = vld [vmem:[%s1 + $0x260] sm:$0xff]
  %v95 = vld [vmem:[%s1 + $0x268] sm:$0xff]
  %v96 = vld [vmem:[%s1 + $0x270] sm:$0xff]
  %v97 = vld [vmem:[%s1 + $0x278] sm:$0xff]
  %v98 = vld [vmem:[%s1 + $0x280] sm:$0xff]
  %v99 = vld [vmem:[%s1 + $0x288] sm:$0xff]
  %v100 = vld [vmem:[%s1 + $0x290] sm:$0xff]
  %v101 = vld [vmem:[%s1 + $0x298] sm:$0xff]
  %v102 = vld [vmem:[%s1 + $0x2a0] sm:$0xff]
  %v103 = vld [vmem:[%s1 + $0x2a8] sm:$0xff]
  %v104 = vld [vmem:[%s1 + $0x2b0] sm:$0xff]
  %v105 = vld [vmem:[%s1 + $0x2b8] sm:$0xff]
  %v106 = vld [vmem:[%s1 + $0x2c0] sm:$0xff]
  %v107 = vld [vmem:[%s1 + $0x2c8] sm:$0xff]
  %v108 = vld [vmem:[%s1 + $0x2d0] sm:$0xff]
  %v109 = vld [vmem:[%s1 + $0x2d8] sm:$0xff]
  %v110 = vld [vmem:[%s1 + $0x2e0] sm:$0xff]
  %v111 = vld [vmem:[%s1 + $0x2e8] sm:$0xff]
  %v112 = vld [vmem:[%s1 + $0x2f0] sm:$0xff]
  %v113 = vld [vmem:[%s1 + $0x2f8] sm:$0xff]
  %v114 = vld [vmem:[%s1 + $0x300] sm:$0xff]
  %v115 = vld [vmem:[%s1 + $0x308] sm:$0xff]
  %v116 = vld [vmem:[%s1 + $0x310] sm:$0xff]
  %v117 = vld [vmem:[%s1 + $0x318] sm:$0xff]
  %v118 = vld [vmem:[%s1 + $0x320] sm:$0xff]
  %v119 = vld [vmem:[%s1 + $0x328] sm:$0xff]
  %v120 = vld [vmem:[%s1 + $0x330] sm:$0xff]
  %v121 = vld [vmem:[%s1 + $0x338] sm:$0xff]
  %v122 = vld [vmem:[%s1 + $0x340] sm:$0xff]
  %v123 = vld [vmem:[%s1 + $0x348] sm:$0xff]
  %v124 = vld [vmem:[%s1 + $0x350] sm:$0xff]
  %v125 = vld [vmem:[%s1 + $0x358] sm:$0xff]
  %v126 = vld [vmem:[%s1 + $0x360] sm:$0xff]
  %v127 = vld [vmem:[%s1 + $0x368] sm:$0xff]
  %v128 = vld [vmem:[%s1 + $0x370] sm:$0xff]
  %v129 = vld [vmem:[%s1 + $0x378] sm:$0xff]
  %v130 = vld [vmem:[%s1 + $0x380] sm:$0xff]
  %v131 = vld [vmem:[%s1 + $0x388] sm:$0xff]
  %v132 = vld [vmem:[%s1 + $0x390] sm:$0xff]
  %v133 = vld [vmem:[%s1 + $0x398] sm:$0xff]
  %v134 = vld [vmem:[%s1 + $0x3a0] sm:$0xff]
  %v135 = vld [vmem:[%s1 + $0x3a8] sm:$0xff]
  %v136 = vld [vmem:[%s1 + $0x3b0] sm:$0xff]
  %v137 = vld [vmem:[%s1 + $0x3b8] sm:$0xff]
  %v138 = vld [vmem:[%s1 + $0x3c0] sm:$0xff]
  %v139 = vld [vmem:[%s1 + $0x3c8] sm:$0xff]
  %v140 = vld [vmem:[%s1 + $0x3d0] sm:$0xff]
  %v141 = vld [vmem:[%s1 + $0x3d8] sm:$0xff]
  %v142 = vld [vmem:[%s1 + $0x3e0] sm:$0xff]
  %v143 = vld [vmem:[%s1 + $0x3e8] sm:$0xff]
  %v144 = vld [vmem:[%s1 + $0x3f0] sm:$0xff]
  %v145 = vld [vmem:[%s1 + $0x3f8] sm:$0xff]
  %v146 = vld [vmem:[%s1 + $0x400] sm:$0xff]
  %v147 = vld [vmem:[%s1 + $0x408] sm:$0xff]
  %v148 = vld [vmem:[%s1 + $0x410] sm:$0xff]
  %v149 = vld [vmem:[%s1 + $0x418] sm:$0xff]
  %v150 = vld [vmem:[%s1 + $0x420] sm:$0xff]
  %v151 = vld [vmem:[%s1 + $0x428] sm:$0xff]
  %v152 = vld [vmem:[%s1 + $0x430] sm:$0xff]
  %v153 = vld [vmem:[%s1 + $0x438] sm:$0xff]
  %v154 = vld [vmem:[%s1 + $0x440] sm:$0xff]
  %v155 = vld [vmem:[%s1 + $0x448] sm:$0xff]
  %v156 = vld [vmem:[%s1 + $0x450] sm:$0xff]
  %v157 = vld [vmem:[%s1 + $0x458] sm:$0xff]
  %v158 = vld [vmem:[%s1 + $0x460] sm:$0xff]
  %v159 = vld [vmem:[%s1 + $0x468] sm:$0xff]
  %v160 = vld [vmem:[%s1 + $0x470] sm:$0xff]
  %v161 = vld [vmem:[%s1 + $0x478] sm:$0xff]
  %v162 = vld [vmem:[%s1 + $0x480] sm:$0xff]
  %v163 = vld [vmem:[%s1 + $0x488] sm:$0xff]
  %v164 = vld [vmem:[%s1 + $0x490] sm:$0xff]
  %v165 = vld [vmem:[%s1 + $0x498] sm:$0xff]
  %v172 = vunpack.c.l.b16 %v12
  %v173 = vunpack.c.h.b16 %v12
  %v174 = vunpack.c.l.b16 %v13
  %v175 = vunpack.c.h.b16 %v13
  %v176 = vunpack.c.l.b16 %v14
  %v177 = vunpack.c.l.b16 %v15
  %v178 = vunpack.c.h.b16 %v15
  %v179 = vunpack.c.l.b16 %v16
  %v180 = vunpack.c.h.b16 %v16
  %v181 = vunpack.c.l.b16 %v17
  %v182 = vpack.c.b16 %v177, %v172
  %v183 = vpack.c.b16 %v178, %v173
  %v184 = vpack.c.b16 %v179, %v174
  %v185 = vpack.c.b16 %v180, %v175
  %v186 = vpack.c.b16 %v181, %v176
  %v339 = vunpack.c.l.b16 %v18
  %v340 = vunpack.c.h.b16 %v18
  %v341 = vunpack.c.l.b16 %v19
  %v342 = vunpack.c.h.b16 %v19
  %v343 = vunpack.c.l.b16 %v20
  %v344 = vunpack.c.h.b16 %v20
  %v345 = vunpack.c.l.b16 %v21
  %v346 = vunpack.c.h.b16 %v21
  %v347 = vunpack.c.l.b16 %v22
  %v348 = vunpack.c.h.b16 %v22
  %v349 = vunpack.c.l.b16 %v23
  %v350 = vunpack.c.h.b16 %v23
  %v351 = vunpack.c.l.b16 %v24
  %v352 = vunpack.c.h.b16 %v24
  %v353 = vunpack.c.l.b16 %v25
  %v354 = vunpack.c.h.b16 %v25
  %v355 = vunpack.c.l.b16 %v26
  %v356 = vunpack.c.h.b16 %v26
  %v357 = vunpack.c.l.b16 %v27
  %v358 = vunpack.c.h.b16 %v27
  %v359 = vunpack.c.l.b16 %v28
  %v360 = vunpack.c.h.b16 %v28
  %v361 = vunpack.c.l.b16 %v29
  %v362 = vunpack.c.h.b16 %v29
  %v363 = vunpack.c.l.b16 %v30
  %v364 = vunpack.c.h.b16 %v30
  %v365 = vunpack.c.l.b16 %v31
  %v366 = vunpack.c.h.b16 %v31
  %v367 = vunpack.c.l.b16 %v32
  %v368 = vunpack.c.h.b16 %v32
  %v369 = vunpack.c.l.b16 %v33
  %v370 = vunpack.c.h.b16 %v33
  %v371 = vunpack.c.l.b16 %v34
  %v372 = vunpack.c.h.b16 %v34
  %v373 = vunpack.c.l.b16 %v35
  %v374 = vunpack.c.h.b16 %v35
  %v375 = vunpack.c.l.b16 %v36
  %v376 = vunpack.c.h.b16 %v36
  %v377 = vunpack.c.l.b16 %v37
  %v378 = vunpack.c.h.b16 %v37
  %v379 = vunpack.c.l.b16 %v38
  %v380 = vunpack.c.h.b16 %v38
  %v381 = vunpack.c.l.b16 %v39
  %v382 = vunpack.c.h.b16 %v39
  %v383 = vunpack.c.l.b16 %v40
  %v384 = vunpack.c.h.b16 %v40
  %v385 = vunpack.c.l.b16 %v41
  %v386 = vunpack.c.h.b16 %v41
  %v387 = vunpack.c.l.b16 %v42
  %v388 = vunpack.c.h.b16 %v42
  %v389 = vunpack.c.l.b16 %v43
  %v390 = vunpack.c.h.b16 %v43
  %v391 = vunpack.c.l.b16 %v44
  %v392 = vunpack.c.h.b16 %v44
  %v393 = vunpack.c.l.b16 %v45
  %v394 = vunpack.c.h.b16 %v45
  %v395 = vunpack.c.l.b16 %v46
  %v396 = vunpack.c.h.b16 %v46
  %v397 = vunpack.c.l.b16 %v47
  %v398 = vunpack.c.h.b16 %v47
  %v399 = vunpack.c.l.b16 %v48
  %v400 = vunpack.c.h.b16 %v48
  %v401 = vunpack.c.l.b16 %v49
  %v402 = vunpack.c.h.b16 %v49
  %v403 = vunpack.c.l.b16 %v50
  %v404 = vunpack.c.h.b16 %v50
  %v405 = vunpack.c.l.b16 %v51
  %v406 = vunpack.c.h.b16 %v51
  %v407 = vunpack.c.l.b16 %v52
  %v408 = vunpack.c.h.b16 %v52
  %v409 = vunpack.c.l.b16 %v53
  %v410 = vunpack.c.h.b16 %v53
  %v411 = vunpack.c.l.b16 %v54
  %v412 = vunpack.c.h.b16 %v54
  %v413 = vunpack.c.l.b16 %v55
  %v414 = vunpack.c.h.b16 %v55
  %v415 = vunpack.c.l.b16 %v56
  %v416 = vunpack.c.h.b16 %v56
  %v417 = vunpack.c.l.b16 %v57
  %v418 = vunpack.c.h.b16 %v57
  %v419 = vunpack.c.l.b16 %v58
  %v420 = vunpack.c.h.b16 %v58
  %v421 = vunpack.c.l.b16 %v59
  %v422 = vunpack.c.h.b16 %v59
  %v423 = vunpack.c.l.b16 %v60
  %v424 = vunpack.c.h.b16 %v60
  %v425 = vunpack.c.l.b16 %v61
  %v426 = vunpack.c.h.b16 %v61
  %v427 = vunpack.c.l.b16 %v62
  %v428 = vunpack.c.h.b16 %v62
  %v429 = vunpack.c.l.b16 %v63
  %v430 = vunpack.c.h.b16 %v63
  %v431 = vunpack.c.l.b16 %v64
  %v432 = vunpack.c.h.b16 %v64
  %v433 = vunpack.c.l.b16 %v65
  %v434 = vunpack.c.h.b16 %v65
  %v435 = vunpack.c.l.b16 %v66
  %v436 = vunpack.c.h.b16 %v66
  %v437 = vunpack.c.l.b16 %v67
  %v438 = vunpack.c.h.b16 %v67
  %v439 = vunpack.c.l.b16 %v68
  %v440 = vunpack.c.h.b16 %v68
  %v441 = vunpack.c.l.b16 %v69
  %v442 = vunpack.c.h.b16 %v69
  %v443 = vunpack.c.l.b16 %v70
  %v444 = vunpack.c.h.b16 %v70
  %v445 = vunpack.c.l.b16 %v71
  %v446 = vunpack.c.h.b16 %v71
  %v447 = vunpack.c.l.b16 %v72
  %v448 = vunpack.c.h.b16 %v72
  %v449 = vunpack.c.l.b16 %v73
  %v450 = vunpack.c.h.b16 %v73
  %v451 = vunpack.c.l.b16 %v74
  %v452 = vunpack.c.h.b16 %v74
  %v453 = vunpack.c.l.b16 %v75
  %v454 = vunpack.c.h.b16 %v75
  %v455 = vunpack.c.l.b16 %v76
  %v456 = vunpack.c.h.b16 %v76
  %v457 = vunpack.c.l.b16 %v77
  %v458 = vunpack.c.h.b16 %v77
  %v459 = vunpack.c.l.b16 %v78
  %v460 = vunpack.c.h.b16 %v78
  %v461 = vunpack.c.l.b16 %v79
  %v462 = vunpack.c.h.b16 %v79
  %v463 = vunpack.c.l.b16 %v80
  %v464 = vunpack.c.h.b16 %v80
  %v465 = vunpack.c.l.b16 %v81
  %v466 = vunpack.c.h.b16 %v81
  %v467 = vunpack.c.l.b16 %v82
  %v468 = vunpack.c.h.b16 %v82
  %v469 = vunpack.c.l.b16 %v83
  %v470 = vunpack.c.h.b16 %v83
  %v471 = vunpack.c.l.b16 %v84
  %v472 = vunpack.c.h.b16 %v84
  %v473 = vunpack.c.l.b16 %v85
  %v474 = vunpack.c.h.b16 %v85
  %v475 = vunpack.c.l.b16 %v86
  %v476 = vunpack.c.h.b16 %v86
  %v477 = vunpack.c.l.b16 %v87
  %v478 = vunpack.c.h.b16 %v87
  %v479 = vunpack.c.l.b16 %v88
  %v480 = vunpack.c.h.b16 %v88
  %v481 = vunpack.c.l.b16 %v89
  %v482 = vunpack.c.h.b16 %v89
  %v483 = vunpack.c.l.b16 %v90
  %v484 = vunpack.c.h.b16 %v90
  %v485 = vunpack.c.l.b16 %v91
  %v486 = vunpack.c.h.b16 %v91
  %v487 = vunpack.c.l.b16 %v92
  %v488 = vunpack.c.h.b16 %v92
  %v489 = vunpack.c.l.b16 %v93
  %v490 = vunpack.c.h.b16 %v93
  %v491 = vunpack.c.l.b16 %v94
  %v492 = vunpack.c.h.b16 %v94
  %v493 = vunpack.c.l.b16 %v95
  %v494 = vunpack.c.h.b16 %v95
  %v495 = vunpack.c.l.b16 %v96
  %v496 = vunpack.c.h.b16 %v96
  %v497 = vunpack.c.l.b16 %v97
  %v498 = vunpack.c.h.b16 %v97
  %v499 = vunpack.c.l.b16 %v98
  %v500 = vunpack.c.h.b16 %v98
  %v501 = vunpack.c.l.b16 %v99
  %v502 = vunpack.c.h.b16 %v99
  %v503 = vunpack.c.l.b16 %v100
  %v504 = vunpack.c.h.b16 %v100
  %v505 = vunpack.c.l.b16 %v101
  %v506 = vunpack.c.h.b16 %v101
  %v507 = vunpack.c.l.b16 %v102
  %v508 = vunpack.c.h.b16 %v102
  %v509 = vunpack.c.l.b16 %v103
  %v510 = vunpack.c.h.b16 %v103
  %v511 = vunpack.c.l.b16 %v104
  %v512 = vunpack.c.h.b16 %v104
  %v513 = vunpack.c.l.b16 %v105
  %v514 = vunpack.c.h.b16 %v105
  %v515 = vunpack.c.l.b16 %v106
  %v516 = vunpack.c.h.b16 %v106
  %v517 = vunpack.c.l.b16 %v107
  %v518 = vunpack.c.h.b16 %v107
  %v519 = vunpack.c.l.b16 %v108
  %v520 = vunpack.c.h.b16 %v108
  %v521 = vunpack.c.l.b16 %v109
  %v522 = vunpack.c.h.b16 %v109
  %v523 = vunpack.c.l.b16 %v110
  %v524 = vunpack.c.h.b16 %v110
  %v525 = vunpack.c.l.b16 %v111
  %v526 = vunpack.c.h.b16 %v111
  %v527 = vunpack.c.l.b16 %v112
  %v528 = vunpack.c.h.b16 %v112
  %v529 = vunpack.c.l.b16 %v113
  %v530 = vunpack.c.h.b16 %v113
  %v531 = vunpack.c.l.b16 %v114
  %v532 = vunpack.c.h.b16 %v114
  %v533 = vunpack.c.l.b16 %v115
  %v534 = vunpack.c.h.b16 %v115
  %v535 = vunpack.c.l.b16 %v116
  %v536 = vunpack.c.h.b16 %v116
  %v537 = vunpack.c.l.b16 %v117
  %v538 = vunpack.c.h.b16 %v117
  %v539 = vunpack.c.l.b16 %v118
  %v540 = vunpack.c.h.b16 %v118
  %v541 = vunpack.c.l.b16 %v119
  %v542 = vunpack.c.h.b16 %v119
  %v543 = vunpack.c.l.b16 %v120
  %v544 = vunpack.c.h.b16 %v120
  %v545 = vunpack.c.l.b16 %v121
  %v546 = vunpack.c.h.b16 %v121
  %v547 = vunpack.c.l.b16 %v122
  %v548 = vunpack.c.h.b16 %v122
  %v549 = vunpack.c.l.b16 %v123
  %v550 = vunpack.c.h.b16 %v123
  %v551 = vunpack.c.l.b16 %v124
  %v552 = vunpack.c.h.b16 %v124
  %v553 = vunpack.c.l.b16 %v125
  %v554 = vunpack.c.h.b16 %v125
  %v555 = vunpack.c.l.b16 %v126
  %v556 = vunpack.c.h.b16 %v126
  %v557 = vunpack.c.l.b16 %v127
  %v558 = vunpack.c.h.b16 %v127
  %v559 = vunpack.c.l.b16 %v128
  %v560 = vunpack.c.h.b16 %v128
  %v561 = vunpack.c.l.b16 %v129
  %v562 = vunpack.c.h.b16 %v129
  %v563 = vunpack.c.l.b16 %v130
  %v564 = vunpack.c.h.b16 %v130
  %v565 = vunpack.c.l.b16 %v131
  %v566 = vunpack.c.h.b16 %v131
  %v567 = vunpack.c.l.b16 %v132
  %v568 = vunpack.c.h.b16 %v132
  %v569 = vunpack.c.l.b16 %v133
  %v570 = vunpack.c.h.b16 %v133
  %v571 = vunpack.c.l.b16 %v134
  %v572 = vunpack.c.h.b16 %v134
  %v573 = vunpack.c.l.b16 %v135
  %v574 = vunpack.c.h.b16 %v135
  %v575 = vunpack.c.l.b16 %v136
  %v576 = vunpack.c.h.b16 %v136
  %v577 = vunpack.c.l.b16 %v137
  %v578 = vunpack.c.h.b16 %v137
  %v579 = vunpack.c.l.b16 %v138
  %v580 = vunpack.c.h.b16 %v138
  %v581 = vunpack.c.l.b16 %v139
  %v582 = vunpack.c.h.b16 %v139
  %v583 = vunpack.c.l.b16 %v140
  %v584 = vunpack.c.h.b16 %v140
  %v585 = vunpack.c.l.b16 %v141
  %v586 = vunpack.c.h.b16 %v141
  %v587 = vunpack.c.l.b16 %v142
  %v588 = vunpack.c.h.b16 %v142
  %v589 = vunpack.c.l.b16 %v143
  %v590 = vunpack.c.h.b16 %v143
  %v591 = vunpack.c.l.b16 %v144
  %v592 = vunpack.c.h.b16 %v144
  %v593 = vunpack.c.l.b16 %v145
  %v594 = vunpack.c.h.b16 %v145
  %v595 = vunpack.c.l.b16 %v146
  %v596 = vunpack.c.h.b16 %v146
  %v597 = vunpack.c.l.b16 %v147
  %v598 = vunpack.c.h.b16 %v147
  %v599 = vunpack.c.l.b16 %v148
  %v600 = vunpack.c.h.b16 %v148
  %v601 = vunpack.c.l.b16 %v149
  %v602 = vunpack.c.h.b16 %v149
  %v603 = vunpack.c.l.b16 %v150
  %v604 = vunpack.c.h.b16 %v150
  %v605 = vunpack.c.l.b16 %v151
  %v606 = vunpack.c.h.b16 %v151
  %v607 = vunpack.c.l.b16 %v152
  %v608 = vunpack.c.h.b16 %v152
  %v609 = vunpack.c.l.b16 %v153
  %v610 = vunpack.c.h.b16 %v153
  %v611 = vunpack.c.l.b16 %v154
  %v612 = vunpack.c.h.b16 %v154
  %v613 = vunpack.c.l.b16 %v155
  %v614 = vunpack.c.h.b16 %v155
  %v615 = vunpack.c.l.b16 %v156
  %v616 = vunpack.c.h.b16 %v156
  %v617 = vunpack.c.l.b16 %v157
  %v618 = vunpack.c.h.b16 %v157
  %v619 = vunpack.c.l.b16 %v158
  %v620 = vunpack.c.h.b16 %v158
  %v621 = vunpack.c.l.b16 %v159
  %v622 = vunpack.c.h.b16 %v159
  %v623 = vunpack.c.l.b16 %v160
  %v624 = vunpack.c.h.b16 %v160
  %v625 = vunpack.c.l.b16 %v161
  %v626 = vunpack.c.h.b16 %v161
  %v627 = vunpack.c.l.b16 %v162
  %v628 = vunpack.c.h.b16 %v162
  %v629 = vunpack.c.l.b16 %v163
  %v630 = vunpack.c.h.b16 %v163
  %v631 = vunpack.c.l.b16 %v164
  %v632 = vunpack.c.h.b16 %v164
  %v633 = vunpack.c.l.b16 %v165
  %v634 = vunpack.c.h.b16 %v165
  %v635 = vpack.c.b16 %v343, %v339
  %v636 = vpack.c.b16 %v344, %v340
  %v637 = vpack.c.b16 %v345, %v341
  %v638 = vpack.c.b16 %v346, %v342
  %v639 = vpack.c.b16 %v351, %v347
  %v640 = vpack.c.b16 %v352, %v348
  %v641 = vpack.c.b16 %v353, %v349
  %v642 = vpack.c.b16 %v354, %v350
  %v643 = vpack.c.b16 %v359, %v355
  %v644 = vpack.c.b16 %v360, %v356
  %v645 = vpack.c.b16 %v361, %v357
  %v646 = vpack.c.b16 %v362, %v358
  %v647 = vpack.c.b16 %v367, %v363
  %v648 = vpack.c.b16 %v368, %v364
  %v649 = vpack.c.b16 %v369, %v365
  %v650 = vpack.c.b16 %v370, %v366
  %v651 = vpack.c.b16 %v375, %v371
  %v652 = vpack.c.b16 %v376, %v372
  %v653 = vpack.c.b16 %v377, %v373
  %v654 = vpack.c.b16 %v378, %v374
  %v655 = vpack.c.b16 %v383, %v379
  %v656 = vpack.c.b16 %v384, %v380
  %v657 = vpack.c.b16 %v385, %v381
  %v658 = vpack.c.b16 %v386, %v382
  %v659 = vpack.c.b16 %v391, %v387
  %v660 = vpack.c.b16 %v392, %v388
  %v661 = vpack.c.b16 %v393, %v389
  %v662 = vpack.c.b16 %v394, %v390
  %v663 = vpack.c.b16 %v399, %v395
  %v664 = vpack.c.b16 %v400, %v396
  %v665 = vpack.c.b16 %v401, %v397
  %v666 = vpack.c.b16 %v402, %v398
  %v667 = vpack.c.b16 %v407, %v403
  %v668 = vpack.c.b16 %v408, %v404
  %v669 = vpack.c.b16 %v409, %v405
  %v670 = vpack.c.b16 %v410, %v406
  %v671 = vpack.c.b16 %v415, %v411
  %v672 = vpack.c.b16 %v416, %v412
  %v673 = vpack.c.b16 %v417, %v413
  %v674 = vpack.c.b16 %v418, %v414
  %v675 = vpack.c.b16 %v423, %v419
  %v676 = vpack.c.b16 %v424, %v420
  %v677 = vpack.c.b16 %v425, %v421
  %v678 = vpack.c.b16 %v426, %v422
  %v679 = vpack.c.b16 %v431, %v427
  %v680 = vpack.c.b16 %v432, %v428
  %v681 = vpack.c.b16 %v433, %v429
  %v682 = vpack.c.b16 %v434, %v430
  %v683 = vpack.c.b16 %v439, %v435
  %v684 = vpack.c.b16 %v440, %v436
  %v685 = vpack.c.b16 %v441, %v437
  %v686 = vpack.c.b16 %v442, %v438
  %v687 = vpack.c.b16 %v447, %v443
  %v688 = vpack.c.b16 %v448, %v444
  %v689 = vpack.c.b16 %v449, %v445
  %v690 = vpack.c.b16 %v450, %v446
  %v691 = vpack.c.b16 %v455, %v451
  %v692 = vpack.c.b16 %v456, %v452
  %v693 = vpack.c.b16 %v457, %v453
  %v694 = vpack.c.b16 %v458, %v454
  %v695 = vpack.c.b16 %v463, %v459
  %v696 = vpack.c.b16 %v464, %v460
  %v697 = vpack.c.b16 %v465, %v461
  %v698 = vpack.c.b16 %v466, %v462
  %v699 = vpack.c.b16 %v471, %v467
  %v700 = vpack.c.b16 %v472, %v468
  %v701 = vpack.c.b16 %v473, %v469
  %v702 = vpack.c.b16 %v474, %v470
  %v703 = vpack.c.b16 %v479, %v475
  %v704 = vpack.c.b16 %v480, %v476
  %v705 = vpack.c.b16 %v481, %v477
  %v706 = vpack.c.b16 %v482, %v478
  %v707 = vpack.c.b16 %v487, %v483
  %v708 = vpack.c.b16 %v488, %v484
  %v709 = vpack.c.b16 %v489, %v485
  %v710 = vpack.c.b16 %v490, %v486
  %v711 = vpack.c.b16 %v495, %v491
  %v712 = vpack.c.b16 %v496, %v492
  %v713 = vpack.c.b16 %v497, %v493
  %v714 = vpack.c.b16 %v498, %v494
  %v715 = vpack.c.b16 %v503, %v499
  %v716 = vpack.c.b16 %v504, %v500
  %v717 = vpack.c.b16 %v505, %v501
  %v718 = vpack.c.b16 %v506, %v502
  %v719 = vpack.c.b16 %v511, %v507
  %v720 = vpack.c.b16 %v512, %v508
  %v721 = vpack.c.b16 %v513, %v509
  %v722 = vpack.c.b16 %v514, %v510
  %v723 = vpack.c.b16 %v519, %v515
  %v724 = vpack.c.b16 %v520, %v516
  %v725 = vpack.c.b16 %v521, %v517
  %v726 = vpack.c.b16 %v522, %v518
  %v727 = vpack.c.b16 %v527, %v523
  %v728 = vpack.c.b16 %v528, %v524
  %v729 = vpack.c.b16 %v529, %v525
  %v730 = vpack.c.b16 %v530, %v526
  %v731 = vpack.c.b16 %v535, %v531
  %v732 = vpack.c.b16 %v536, %v532
  %v733 = vpack.c.b16 %v537, %v533
  %v734 = vpack.c.b16 %v538, %v534
  %v735 = vpack.c.b16 %v543, %v539
  %v736 = vpack.c.b16 %v544, %v540
  %v737 = vpack.c.b16 %v545, %v541
  %v738 = vpack.c.b16 %v546, %v542
  %v739 = vpack.c.b16 %v551, %v547
  %v740 = vpack.c.b16 %v552, %v548
  %v741 = vpack.c.b16 %v553, %v549
  %v742 = vpack.c.b16 %v554, %v550
  %v743 = vpack.c.b16 %v559, %v555
  %v744 = vpack.c.b16 %v560, %v556
  %v745 = vpack.c.b16 %v561, %v557
  %v746 = vpack.c.b16 %v562, %v558
  %v747 = vpack.c.b16 %v567, %v563
  %v748 = vpack.c.b16 %v568, %v564
  %v749 = vpack.c.b16 %v569, %v565
  %v750 = vpack.c.b16 %v570, %v566
  %v751 = vpack.c.b16 %v575, %v571
  %v752 = vpack.c.b16 %v576, %v572
  %v753 = vpack.c.b16 %v577, %v573
  %v754 = vpack.c.b16 %v578, %v574
  %v755 = vpack.c.b16 %v583, %v579
  %v756 = vpack.c.b16 %v584, %v580
  %v757 = vpack.c.b16 %v585, %v581
  %v758 = vpack.c.b16 %v586, %v582
  %v759 = vpack.c.b16 %v591, %v587
  %v760 = vpack.c.b16 %v592, %v588
  %v761 = vpack.c.b16 %v593, %v589
  %v762 = vpack.c.b16 %v594, %v590
  %v763 = vpack.c.b16 %v599, %v595
  %v764 = vpack.c.b16 %v600, %v596
  %v765 = vpack.c.b16 %v601, %v597
  %v766 = vpack.c.b16 %v602, %v598
  %v767 = vpack.c.b16 %v607, %v603
  %v768 = vpack.c.b16 %v608, %v604
  %v769 = vpack.c.b16 %v609, %v605
  %v770 = vpack.c.b16 %v610, %v606
  %v771 = vpack.c.b16 %v615, %v611
  %v772 = vpack.c.b16 %v616, %v612
  %v773 = vpack.c.b16 %v617, %v613
  %v774 = vpack.c.b16 %v618, %v614
  %v775 = vpack.c.b16 %v623, %v619
  %v776 = vpack.c.b16 %v624, %v620
  %v777 = vpack.c.b16 %v625, %v621
  %v778 = vpack.c.b16 %v626, %v622
  %v779 = vpack.c.b16 %v631, %v627
  %v780 = vpack.c.b16 %v632, %v628
  %v781 = vpack.c.b16 %v633, %v629
  %v782 = vpack.c.b16 %v634, %v630
  %vm931 = vcmask 654336
  %v933 = vsel %vm931, %v186, 0
  %935 = vmatprep.subr.bf16.mxu0 %v664
  %936 = vmatpush1.bf16.msra.mxu0 %v663
  %937 = vmatprep.subr.bf16.mxu0 %v660
  %938 = vmatpush1.bf16.msra.mxu0 %v659
  %939 = vmatprep.subr.bf16.mxu0 %v656
  %940 = vmatpush1.bf16.msra.mxu0 %v655
  %941 = vmatprep.subr.bf16.mxu0 %v652
  %942 = vmatpush1.bf16.msra.mxu0 %v651
  %943 = vmatprep.subr.bf16.mxu0 %v648
  %944 = vmatpush1.bf16.msra.mxu0 %v647
  %945 = vmatprep.subr.bf16.mxu0 %v644
  %946 = vmatpush1.bf16.msra.mxu0 %v643
  %947 = vmatprep.subr.bf16.mxu0 %v640
  %948 = vmatpush1.bf16.msra.mxu0 %v639
  %949 = vmatprep.subr.bf16.mxu0 %v636
  %950 = vmatpush1.bf16.msra.mxu0 %v635
  %951 = vmatprep.subr.bf16.mxu0 %v696
  %952 = vmatpush2.bf16.msra.mxu0 %v695
  %953 = vmatprep.subr.bf16.mxu0 %v692
  %954 = vmatpush2.bf16.msra.mxu0 %v691
  %955 = vmatprep.subr.bf16.mxu0 %v688
  %956 = vmatpush2.bf16.msra.mxu0 %v687
  %957 = vmatprep.subr.bf16.mxu0 %v684
  %958 = vmatpush2.bf16.msra.mxu0 %v683
  %959 = vmatprep.subr.bf16.mxu0 %v680
  %960 = vmatpush2.bf16.msra.mxu0 %v679
  %961 = vmatprep.subr.bf16.mxu0 %v676
  %962 = vmatpush2.bf16.msra.mxu0 %v675
  %963 = vmatprep.subr.bf16.mxu0 %v672
  %964 = vmatpush2.bf16.msra.mxu0 %v671
  %965 = vmatprep.subr.bf16.mxu0 %v668
  %966 = vmatpush2.bf16.msra.mxu0 %v667
  %967 = vmatprep.mubr.bf16.mxu0 %v183
  %968 = vmatmul.mubr.bf16.gmra.mxu0 %v182
  %v969 = vpop.f32.mrf.mxu0
  %v970 = vadd.f32 0.0, %v969
  %v971 = vpop.f32.mrf.mxu0
  %v972 = vadd.f32 0.0, %v971
  %v973 = vpop.f32.mrf.mxu0
  %v974 = vadd.f32 0.0, %v973
  %v975 = vpop.f32.mrf.mxu0
  %v976 = vadd.f32 0.0, %v975
  %977 = vdwg.mxu0
  %978 = vmatprep.subr.bf16.mxu0 %v728
  %979 = vmatpush1.bf16.msra.mxu0 %v727
  %980 = vmatprep.subr.bf16.mxu0 %v724
  %981 = vmatpush1.bf16.msra.mxu0 %v723
  %982 = vmatprep.subr.bf16.mxu0 %v720
  %983 = vmatpush1.bf16.msra.mxu0 %v719
  %984 = vmatprep.subr.bf16.mxu0 %v716
  %985 = vmatpush1.bf16.msra.mxu0 %v715
  %986 = vmatprep.subr.bf16.mxu0 %v712
  %987 = vmatpush1.bf16.msra.mxu0 %v711
  %988 = vmatprep.subr.bf16.mxu0 %v708
  %989 = vmatpush1.bf16.msra.mxu0 %v707
  %990 = vmatprep.subr.bf16.mxu0 %v704
  %991 = vmatpush1.bf16.msra.mxu0 %v703
  %992 = vmatprep.subr.bf16.mxu0 %v700
  %993 = vmatpush1.bf16.msra.mxu0 %v699
  %994 = vmatprep.subr.bf16.mxu0 %v760
  %995 = vmatpush2.bf16.msra.mxu0 %v759
  %996 = vmatprep.subr.bf16.mxu0 %v756
  %997 = vmatpush2.bf16.msra.mxu0 %v755
  %998 = vmatprep.subr.bf16.mxu0 %v752
  %999 = vmatpush2.bf16.msra.mxu0 %v751
  %1000 = vmatprep.subr.bf16.mxu0 %v748
  %1001 = vmatpush2.bf16.msra.mxu0 %v747
  %1002 = vmatprep.subr.bf16.mxu0 %v744
  %1003 = vmatpush2.bf16.msra.mxu0 %v743
  %1004 = vmatprep.subr.bf16.mxu0 %v740
  %1005 = vmatpush2.bf16.msra.mxu0 %v739
  %1006 = vmatprep.subr.bf16.mxu0 %v736
  %1007 = vmatpush2.bf16.msra.mxu0 %v735
  %1008 = vmatprep.subr.bf16.mxu0 %v732
  %1009 = vmatpush2.bf16.msra.mxu0 %v731
  %1010 = vmatprep.mubr.bf16.mxu0 %v185
  %1011 = vmatmul.mubr.bf16.gmra.mxu0 %v184
  %v1012 = vpop.f32.mrf.mxu0
  %v1013 = vadd.f32 %v970, %v1012
  %v1014 = vpop.f32.mrf.mxu0
  %v1015 = vadd.f32 %v972, %v1014
  %v1016 = vpop.f32.mrf.mxu0
  %v1017 = vadd.f32 %v974, %v1016
  %v1018 = vpop.f32.mrf.mxu0
  %v1019 = vadd.f32 %v976, %v1018
  %1020 = vdwg.mxu0
  %1021 = vmatprep.subr.bf16.mxu0 0
  %1022 = vmatpush1.bf16.msra.mxu0 0
  %1023 = vmatprep.subr.bf16.mxu0 0
  %1024 = vmatpush1.bf16.msra.mxu0 0
  %1025 = vmatprep.subr.bf16.mxu0 0
  %1026 = vmatpush1.bf16.msra.mxu0 0
  %1027 = vmatprep.subr.bf16.mxu0 %v780
  %1028 = vmatpush1.bf16.msra.mxu0 %v779
  %1029 = vmatprep.subr.bf16.mxu0 %v776
  %1030 = vmatpush1.bf16.msra.mxu0 %v775
  %1031 = vmatprep.subr.bf16.mxu0 %v772
  %1032 = vmatpush1.bf16.msra.mxu0 %v771
  %1033 = vmatprep.subr.bf16.mxu0 %v768
  %1034 = vmatpush1.bf16.msra.mxu0 %v767
  %1035 = vmatprep.subr.bf16.mxu0 %v764
  %1036 = vmatpush1.bf16.msra.mxu0 %v763
  %1037 = vmatprep.subr.bf16.mxu0 0
  %1038 = vmatpush2.bf16.msra.mxu0 0
  %1039 = vmatprep.subr.bf16.mxu0 0
  %1040 = vmatpush2.bf16.msra.mxu0 0
  %1041 = vmatprep.subr.bf16.mxu0 0
  %1042 = vmatpush2.bf16.msra.mxu0 0
  %1043 = vmatprep.subr.bf16.mxu0 0
  %1044 = vmatpush2.bf16.msra.mxu0 0
  %1045 = vmatprep.subr.bf16.mxu0 0
  %1046 = vmatpush2.bf16.msra.mxu0 0
  %1047 = vmatprep.subr.bf16.mxu0 0
  %1048 = vmatpush2.bf16.msra.mxu0 0
  %1049 = vmatprep.subr.bf16.mxu0 0
  %1050 = vmatpush2.bf16.msra.mxu0 0
  %1051 = vmatprep.subr.bf16.mxu0 0
  %1052 = vmatpush2.bf16.msra.mxu0 0
  %1053 = vmatprep.mubr.bf16.mxu0 0
  %1054 = vmatmul.mubr.bf16.gmra.mxu0 %v933
  %v1055 = vpop.f32.mrf.mxu0
  %v1056 = vadd.f32 %v1013, %v1055
  %v1057 = vpop.f32.mrf.mxu0
  %v1058 = vadd.f32 %v1015, %v1057
  %v1059 = vpop.f32.mrf.mxu0
  %v1060 = vadd.f32 %v1017, %v1059
  %v1061 = vpop.f32.mrf.mxu0
  %v1062 = vadd.f32 %v1019, %v1061
  %1063 = vdwg.mxu0
  %1064 = vmatprep.subr.bf16.mxu0 %v666
  %1065 = vmatpush1.bf16.msra.mxu0 %v665
  %1066 = vmatprep.subr.bf16.mxu0 %v662
  %1067 = vmatpush1.bf16.msra.mxu0 %v661
  %1068 = vmatprep.subr.bf16.mxu0 %v658
  %1069 = vmatpush1.bf16.msra.mxu0 %v657
  %1070 = vmatprep.subr.bf16.mxu0 %v654
  %1071 = vmatpush1.bf16.msra.mxu0 %v653
  %1072 = vmatprep.subr.bf16.mxu0 %v650
  %1073 = vmatpush1.bf16.msra.mxu0 %v649
  %1074 = vmatprep.subr.bf16.mxu0 %v646
  %1075 = vmatpush1.bf16.msra.mxu0 %v645
  %1076 = vmatprep.subr.bf16.mxu0 %v642
  %1077 = vmatpush1.bf16.msra.mxu0 %v641
  %1078 = vmatprep.subr.bf16.mxu0 %v638
  %1079 = vmatpush1.bf16.msra.mxu0 %v637
  %1080 = vmatprep.subr.bf16.mxu0 %v698
  %1081 = vmatpush2.bf16.msra.mxu0 %v697
  %1082 = vmatprep.subr.bf16.mxu0 %v694
  %1083 = vmatpush2.bf16.msra.mxu0 %v693
  %1084 = vmatprep.subr.bf16.mxu0 %v690
  %1085 = vmatpush2.bf16.msra.mxu0 %v689
  %1086 = vmatprep.subr.bf16.mxu0 %v686
  %1087 = vmatpush2.bf16.msra.mxu0 %v685
  %1088 = vmatprep.subr.bf16.mxu0 %v682
  %1089 = vmatpush2.bf16.msra.mxu0 %v681
  %1090 = vmatprep.subr.bf16.mxu0 %v678
  %1091 = vmatpush2.bf16.msra.mxu0 %v677
  %1092 = vmatprep.subr.bf16.mxu0 %v674
  %1093 = vmatpush2.bf16.msra.mxu0 %v673
  %1094 = vmatprep.subr.bf16.mxu0 %v670
  %1095 = vmatpush2.bf16.msra.mxu0 %v669
  %1096 = vmatprep.mubr.bf16.mxu0 %v183
  %1097 = vmatmul.mubr.bf16.gmra.mxu0 %v182
  %v1098 = vpop.f32.mrf.mxu0
  %v1099 = vadd.f32 0.0, %v1098
  %v1100 = vpop.f32.mrf.mxu0
  %v1101 = vadd.f32 0.0, %v1100
  %v1102 = vpop.f32.mrf.mxu0
  %v1103 = vadd.f32 0.0, %v1102
  %v1104 = vpop.f32.mrf.mxu0
  %v1105 = vadd.f32 0.0, %v1104
  %1106 = vdwg.mxu0
  %1107 = vmatprep.subr.bf16.mxu0 %v730
  %1108 = vmatpush1.bf16.msra.mxu0 %v729
  %1109 = vmatprep.subr.bf16.mxu0 %v726
  %1110 = vmatpush1.bf16.msra.mxu0 %v725
  %1111 = vmatprep.subr.bf16.mxu0 %v722
  %1112 = vmatpush1.bf16.msra.mxu0 %v721
  %1113 = vmatprep.subr.bf16.mxu0 %v718
  %1114 = vmatpush1.bf16.msra.mxu0 %v717
  %1115 = vmatprep.subr.bf16.mxu0 %v714
  %1116 = vmatpush1.bf16.msra.mxu0 %v713
  %1117 = vmatprep.subr.bf16.mxu0 %v710
  %1118 = vmatpush1.bf16.msra.mxu0 %v709
  %1119 = vmatprep.subr.bf16.mxu0 %v706
  %1120 = vmatpush1.bf16.msra.mxu0 %v705
  %1121 = vmatprep.subr.bf16.mxu0 %v702
  %1122 = vmatpush1.bf16.msra.mxu0 %v701
  %1123 = vmatprep.subr.bf16.mxu0 %v762
  %1124 = vmatpush2.bf16.msra.mxu0 %v761
  %1125 = vmatprep.subr.bf16.mxu0 %v758
  %1126 = vmatpush2.bf16.msra.mxu0 %v757
  %1127 = vmatprep.subr.bf16.mxu0 %v754
  %1128 = vmatpush2.bf16.msra.mxu0 %v753
  %1129 = vmatprep.subr.bf16.mxu0 %v750
  %1130 = vmatpush2.bf16.msra.mxu0 %v749
  %1131 = vmatprep.subr.bf16.mxu0 %v746
  %1132 = vmatpush2.bf16.msra.mxu0 %v745
  %1133 = vmatprep.subr.bf16.mxu0 %v742
  %1134 = vmatpush2.bf16.msra.mxu0 %v741
  %1135 = vmatprep.subr.bf16.mxu0 %v738
  %1136 = vmatpush2.bf16.msra.mxu0 %v737
  %1137 = vmatprep.subr.bf16.mxu0 %v734
  %1138 = vmatpush2.bf16.msra.mxu0 %v733
  %1139 = vmatprep.mubr.bf16.mxu0 %v185
  %1140 = vmatmul.mubr.bf16.gmra.mxu0 %v184
  %v1141 = vpop.f32.mrf.mxu0
  %v1142 = vadd.f32 %v1099, %v1141
  %v1143 = vpop.f32.mrf.mxu0
  %v1144 = vadd.f32 %v1101, %v1143
  %v1145 = vpop.f32.mrf.mxu0
  %v1146 = vadd.f32 %v1103, %v1145
  %v1147 = vpop.f32.mrf.mxu0
  %v1148 = vadd.f32 %v1105, %v1147
  %1149 = vdwg.mxu0
  %1150 = vmatprep.subr.bf16.mxu0 0
  %1151 = vmatpush1.bf16.msra.mxu0 0
  %1152 = vmatprep.subr.bf16.mxu0 0
  %1153 = vmatpush1.bf16.msra.mxu0 0
  %1154 = vmatprep.subr.bf16.mxu0 0
  %1155 = vmatpush1.bf16.msra.mxu0 0
  %1156 = vmatprep.subr.bf16.mxu0 %v782
  %1157 = vmatpush1.bf16.msra.mxu0 %v781
  %1158 = vmatprep.subr.bf16.mxu0 %v778
  %1159 = vmatpush1.bf16.msra.mxu0 %v777
  %1160 = vmatprep.subr.bf16.mxu0 %v774
  %1161 = vmatpush1.bf16.msra.mxu0 %v773
  %1162 = vmatprep.subr.bf16.mxu0 %v770
  %1163 = vmatpush1.bf16.msra.mxu0 %v769
  %1164 = vmatprep.subr.bf16.mxu0 %v766
  %1165 = vmatpush1.bf16.msra.mxu0 %v765
  %1166 = vmatprep.subr.bf16.mxu0 0
  %1167 = vmatpush2.bf16.msra.mxu0 0
  %1168 = vmatprep.subr.bf16.mxu0 0
  %1169 = vmatpush2.bf16.msra.mxu0 0
  %1170 = vmatprep.subr.bf16.mxu0 0
  %1171 = vmatpush2.bf16.msra.mxu0 0
  %1172 = vmatprep.subr.bf16.mxu0 0
  %1173 = vmatpush2.bf16.msra.mxu0 0
  %1174 = vmatprep.subr.bf16.mxu0 0
  %1175 = vmatpush2.bf16.msra.mxu0 0
  %1176 = vmatprep.subr.bf16.mxu0 0
  %1177 = vmatpush2.bf16.msra.mxu0 0
  %1178 = vmatprep.subr.bf16.mxu0 0
  %1179 = vmatpush2.bf16.msra.mxu0 0
  %1180 = vmatprep.subr.bf16.mxu0 0
  %1181 = vmatpush2.bf16.msra.mxu0 0
  %1182 = vmatprep.mubr.bf16.mxu0 0
  %1183 = vmatmul.mubr.bf16.gmra.mxu0 %v933
  %v1184 = vpop.f32.mrf.mxu0
  %v1185 = vadd.f32 %v1142, %v1184
  %v1186 = vpop.f32.mrf.mxu0
  %v1187 = vadd.f32 %v1144, %v1186
  %v1188 = vpop.f32.mrf.mxu0
  %v1189 = vadd.f32 %v1146, %v1188
  %v1190 = vpop.f32.mrf.mxu0
  %v1191 = vadd.f32 %v1148, %v1190
  %1192 = vdwg.mxu0
  %v1193 = vmax.f32 %v1056, 0.0
  %v1194 = vmax.f32 %v1058, 0.0
  %v1195 = vmax.f32 %v1185, 0.0
  %v1196 = vmax.f32 %v1187, 0.0
  %v1197 = vmax.f32 %v1060, 0.0
  %v1198 = vmax.f32 %v1062, 0.0
  %v1199 = vmax.f32 %v1189, 0.0
  %v1200 = vmax.f32 %v1191, 0.0
  %v1201 = vpack.c.bf16 %v1197, %v1193
  %v1202 = vpack.c.bf16 %v1198, %v1194
  %v1203 = vpack.c.bf16 %v1199, %v1195
  %v1204 = vpack.c.bf16 %v1200, %v1196
  %v1209 = vunpack.c.l.b16 %v1201
  %v1210 = vunpack.c.l.b16 %v1202
  %v1211 = vunpack.c.l.b16 %v1203
  %v1212 = vunpack.c.l.b16 %v1204
  %v1213 = vunpack.c.h.b16 %v1201
  %v1214 = vunpack.c.h.b16 %v1202
  %v1215 = vunpack.c.h.b16 %v1203
  %v1216 = vunpack.c.h.b16 %v1204
  %v1217 = vpack.c.b16 %v1210, %v1209
  %v1218 = vpack.c.b16 %v1212, %v1211
  %v1219 = vpack.c.b16 %v1214, %v1213
  %v1220 = vpack.c.b16 %v1216, %v1215
  %1225 = vst [vmem:[%s2] sm:$0xff] %v1217
  %1226 = vst [vmem:[%s2 + $0x8] sm:$0xff] %v1218
  %1227 = vst [vmem:[%s2 + $0x10] sm:$0xff] %v1219
  %1228 = vst [vmem:[%s2 + $0x18] sm:$0xff] %v1220
  // Predicated region
  $region10: #{_lambda_.20} parent=0 // pred_check
    _
  $region11: #{_lambda_.20} parent=0 // pred_check_branch
    %1230 = sbr.rel (0) target = $region13
  $region12: #{_lambda_.20} parent=0 // pred_region
    _
  $region13: #{_lambda_.20} parent=0 // pred_fallthru
    _
  // Predicated region
  $region14: #{_lambda_.20} parent=0 // pred_check
    _
  $region15: #{_lambda_.20} parent=0 // pred_check_branch
    %1232 = sbr.rel (0) target = $region17
  $region16: #{_lambda_.20} parent=0 // pred_region
    _
  $region17: #{_lambda_.20} parent=0 // pred_fallthru
    _

// kernel: _lambda_.33
$region0: #{_lambda_.33}
  #allocation0 [shape = 'u32[]', space=smem, size = 0x4, offset = 0x4, fixed_abs, tag = 'smem constant byte address 0x4 - core index']
  #allocation1 [shape = 'u32[144,128]{1,0:T(1,128)}', space=vmem, size = 0x12000, scoped, tag = 'internal scratch']
  %s0 = inlined_call_operand.vmem [shape: bf16[16,32], index: 0, kind: input, shape index: {}]
  %s1 = inlined_call_operand.vmem [shape: bf16[32,512], index: 1, kind: input, shape index: {}]
  %s2 = inlined_call_operand.vmem [shape: bf16[16,512], index: 2, kind: output, shape index: {}]
  %s3 = sld [smem:[#allocation0]]
  $region18: #{_lambda_.33} parent=0
    _
  %s5 = ssub.s32 1, %s3
  %s6 = scalar_select 0, %s5, %s3
  // Predicated region
  $region2: #{_lambda_.33} parent=0 // pred_check
    _
  $region3: #{_lambda_.33} parent=0 // pred_check_branch
    %8 = sbr.rel (0) target = $region5
  $region4: #{_lambda_.33} parent=0 // pred_region
    _
  $region5: #{_lambda_.33} parent=0 // pred_fallthru
    _
  // Predicated region
  $region6: #{_lambda_.33} parent=0 // pred_check
    _
  $region7: #{_lambda_.33} parent=0 // pred_check_branch
    %10 = sbr.rel (0) target = $region9
  $region8: #{_lambda_.33} parent=0 // pred_region
    _
  $region9: #{_lambda_.33} parent=0 // pred_fallthru
    _
  %v12 = vld [vmem:[%s0] sm:$0xf]
  %v13 = vld [vmem:[%s0 + $0x4] sm:$0xf]
  %v14 = vld [vmem:[%s1] sm:$0xff]
  %v15 = vld [vmem:[%s1 + $0x8] sm:$0xff]
  %v16 = vld [vmem:[%s1 + $0x10] sm:$0xff]
  %v17 = vld [vmem:[%s1 + $0x18] sm:$0xff]
  %v18 = vld [vmem:[%s1 + $0x20] sm:$0xff]
  %v19 = vld [vmem:[%s1 + $0x28] sm:$0xff]
  %v20 = vld [vmem:[%s1 + $0x30] sm:$0xff]
  %v21 = vld [vmem:[%s1 + $0x38] sm:$0xff]
  %v24 = vunpack.c.l.b16 %v12
  %v25 = vunpack.c.l.b16 %v13
  %v26 = vpack.c.b16 %v25, %v24
  %v35 = vunpack.c.l.b16 %v14
  %v36 = vunpack.c.h.b16 %v14
  %v37 = vunpack.c.l.b16 %v15
  %v38 = vunpack.c.h.b16 %v15
  %v39 = vunpack.c.l.b16 %v16
  %v40 = vunpack.c.h.b16 %v16
  %v41 = vunpack.c.l.b16 %v17
  %v42 = vunpack.c.h.b16 %v17
  %v43 = vunpack.c.l.b16 %v18
  %v44 = vunpack.c.h.b16 %v18
  %v45 = vunpack.c.l.b16 %v19
  %v46 = vunpack.c.h.b16 %v19
  %v47 = vunpack.c.l.b16 %v20
  %v48 = vunpack.c.h.b16 %v20
  %v49 = vunpack.c.l.b16 %v21
  %v50 = vunpack.c.h.b16 %v21
  %v51 = vpack.c.b16 %v39, %v35
  %v52 = vpack.c.b16 %v40, %v36
  %v53 = vpack.c.b16 %v41, %v37
  %v54 = vpack.c.b16 %v42, %v38
  %v55 = vpack.c.b16 %v47, %v43
  %v56 = vpack.c.b16 %v48, %v44
  %v57 = vpack.c.b16 %v49, %v45
  %v58 = vpack.c.b16 %v50, %v46
  %vm67 = vcmask 261120
  %v69 = vsel %vm67, %v26, 0
  %71 = vmatprep.subr.bf16.mxu0 0
  %72 = vmatpush1.bf16.msra.mxu0 0
  %73 = vmatprep.subr.bf16.mxu0 0
  %74 = vmatpush1.bf16.msra.mxu0 0
  %75 = vmatprep.subr.bf16.mxu0 0
  %76 = vmatpush1.bf16.msra.mxu0 0
  %77 = vmatprep.subr.bf16.mxu0 0
  %78 = vmatpush1.bf16.msra.mxu0 0
  %79 = vmatprep.subr.bf16.mxu0 0
  %80 = vmatpush1.bf16.msra.mxu0 0
  %81 = vmatprep.subr.bf16.mxu0 0
  %82 = vmatpush1.bf16.msra.mxu0 0
  %83 = vmatprep.subr.bf16.mxu0 %v56
  %84 = vmatpush1.bf16.msra.mxu0 %v55
  %85 = vmatprep.subr.bf16.mxu0 %v52
  %86 = vmatpush1.bf16.msra.mxu0 %v51
  %87 = vmatprep.subr.bf16.mxu0 0
  %88 = vmatpush2.bf16.msra.mxu0 0
  %89 = vmatprep.subr.bf16.mxu0 0
  %90 = vmatpush2.bf16.msra.mxu0 0
  %91 = vmatprep.subr.bf16.mxu0 0
  %92 = vmatpush2.bf16.msra.mxu0 0
  %93 = vmatprep.subr.bf16.mxu0 0
  %94 = vmatpush2.bf16.msra.mxu0 0
  %95 = vmatprep.subr.bf16.mxu0 0
  %96 = vmatpush2.bf16.msra.mxu0 0
  %97 = vmatprep.subr.bf16.mxu0 0
  %98 = vmatpush2.bf16.msra.mxu0 0
  %99 = vmatprep.subr.bf16.mxu0 0
  %100 = vmatpush2.bf16.msra.mxu0 0
  %101 = vmatprep.subr.bf16.mxu0 0
  %102 = vmatpush2.bf16.msra.mxu0 0
  %103 = vmatprep.mubr.bf16.mxu0 0
  %104 = vmatmul.mubr.bf16.gmra.mxu0 %v69
  %v105 = vpop.f32.mrf.mxu0
  %v106 = vadd.f32 0.0, %v105
  %v107 = vpop.f32.mrf.mxu0
  %v108 = vadd.f32 0.0, %v107
  %v109 = vpop.f32.mrf.mxu0
  %v110 = vadd.f32 0.0, %v109
  %v111 = vpop.f32.mrf.mxu0
  %v112 = vadd.f32 0.0, %v111
  %113 = vdwg.mxu0
  %114 = vmatprep.subr.bf16.mxu0 0
  %115 = vmatpush1.bf16.msra.mxu0 0
  %116 = vmatprep.subr.bf16.mxu0 0
  %117 = vmatpush1.bf16.msra.mxu0 0
  %118 = vmatprep.subr.bf16.mxu0 0
  %119 = vmatpush1.bf16.msra.mxu0 0
  %120 = vmatprep.subr.bf16.mxu0 0
  %121 = vmatpush1.bf16.msra.mxu0 0
  %122 = vmatprep.subr.bf16.mxu0 0
  %123 = vmatpush1.bf16.msra.mxu0 0
  %124 = vmatprep.subr.bf16.mxu0 0
  %125 = vmatpush1.bf16.msra.mxu0 0
  %126 = vmatprep.subr.bf16.mxu0 %v58
  %127 = vmatpush1.bf16.msra.mxu0 %v57
  %128 = vmatprep.subr.bf16.mxu0 %v54
  %129 = vmatpush1.bf16.msra.mxu0 %v53
  %130 = vmatprep.subr.bf16.mxu0 0
  %131 = vmatpush2.bf16.msra.mxu0 0
  %132 = vmatprep.subr.bf16.mxu0 0
  %133 = vmatpush2.bf16.msra.mxu0 0
  %134 = vmatprep.subr.bf16.mxu0 0
  %135 = vmatpush2.bf16.msra.mxu0 0
  %136 = vmatprep.subr.bf16.mxu0 0
  %137 = vmatpush2.bf16.msra.mxu0 0
  %138 = vmatprep.subr.bf16.mxu0 0
  %139 = vmatpush2.bf16.msra.mxu0 0
  %140 = vmatprep.subr.bf16.mxu0 0
  %141 = vmatpush2.bf16.msra.mxu0 0
  %142 = vmatprep.subr.bf16.mxu0 0
  %143 = vmatpush2.bf16.msra.mxu0 0
  %144 = vmatprep.subr.bf16.mxu0 0
  %145 = vmatpush2.bf16.msra.mxu0 0
  %146 = vmatprep.mubr.bf16.mxu0 0
  %147 = vmatmul.mubr.bf16.gmra.mxu0 %v69
  %v148 = vpop.f32.mrf.mxu0
  %v149 = vadd.f32 0.0, %v148
  %v150 = vpop.f32.mrf.mxu0
  %v151 = vadd.f32 0.0, %v150
  %v152 = vpop.f32.mrf.mxu0
  %v153 = vadd.f32 0.0, %v152
  %v154 = vpop.f32.mrf.mxu0
  %v155 = vadd.f32 0.0, %v154
  %156 = vdwg.mxu0
  %v157 = vmax.f32 %v106, 0.0
  %v158 = vmax.f32 %v108, 0.0
  %v159 = vmax.f32 %v149, 0.0
  %v160 = vmax.f32 %v151, 0.0
  %v161 = vmax.f32 %v110, 0.0
  %v162 = vmax.f32 %v112, 0.0
  %v163 = vmax.f32 %v153, 0.0
  %v164 = vmax.f32 %v155, 0.0
  %v165 = vpack.c.bf16 %v161, %v157
  %v166 = vpack.c.bf16 %v162, %v158
  %v167 = vpack.c.bf16 %v163, %v159
  %v168 = vpack.c.bf16 %v164, %v160
  %v173 = vunpack.c.l.b16 %v165
  %v174 = vunpack.c.l.b16 %v166
  %v175 = vunpack.c.l.b16 %v167
  %v176 = vunpack.c.l.b16 %v168
  %v177 = vunpack.c.h.b16 %v165
  %v178 = vunpack.c.h.b16 %v166
  %v179 = vunpack.c.h.b16 %v167
  %v180 = vunpack.c.h.b16 %v168
  %v181 = vpack.c.b16 %v174, %v173
  %v182 = vpack.c.b16 %v176, %v175
  %v183 = vpack.c.b16 %v178, %v177
  %v184 = vpack.c.b16 %v180, %v179
  %189 = vst [vmem:[%s2] sm:$0xff] %v181
  %190 = vst [vmem:[%s2 + $0x8] sm:$0xff] %v182
  %191 = vst [vmem:[%s2 + $0x10] sm:$0xff] %v183
  %192 = vst [vmem:[%s2 + $0x18] sm:$0xff] %v184
  // Predicated region
  $region10: #{_lambda_.33} parent=0 // pred_check
    _
  $region11: #{_lambda_.33} parent=0 // pred_check_branch
    %194 = sbr.rel (0) target = $region13
  $region12: #{_lambda_.33} parent=0 // pred_region
    _
  $region13: #{_lambda_.33} parent=0 // pred_fallthru
    _
  // Predicated region
  $region14: #{_lambda_.33} parent=0 // pred_check
    _
  $region15: #{_lambda_.33} parent=0 // pred_check_branch
    %196 = sbr.rel (0) target = $region17
  $region16: #{_lambda_.33} parent=0 // pred_region
    _
  $region17: #{_lambda_.33} parent=0 // pred_fallthru
    _

// kernel: _lambda_.35
$region0: #{_lambda_.35}
  #allocation0 [shape = 'u32[]', space=smem, size = 0x4, offset = 0x4, fixed_abs, tag = 'smem constant byte address 0x4 - core index']
  #allocation1 [shape = 'u32[144,128]{1,0:T(1,128)}', space=vmem, size = 0x12000, scoped, tag = 'internal scratch']
  %s0 = inlined_call_operand.vmem [shape: bf16[16,80], index: 0, kind: input, shape index: {}]
  %s1 = inlined_call_operand.vmem [shape: bf16[80,512], index: 1, kind: input, shape index: {}]
  %s2 = inlined_call_operand.vmem [shape: f32[16,512], index: 2, kind: output, shape index: {}]
  %s3 = sld [smem:[#allocation0]]
  $region18: #{_lambda_.35} parent=0
    _
  %s5 = ssub.s32 1, %s3
  %s6 = scalar_select 0, %s5, %s3
  // Predicated region
  $region2: #{_lambda_.35} parent=0 // pred_check
    _
  $region3: #{_lambda_.35} parent=0 // pred_check_branch
    %8 = sbr.rel (0) target = $region5
  $region4: #{_lambda_.35} parent=0 // pred_region
    _
  $region5: #{_lambda_.35} parent=0 // pred_fallthru
    _
  // Predicated region
  $region6: #{_lambda_.35} parent=0 // pred_check
    _
  $region7: #{_lambda_.35} parent=0 // pred_check_branch
    %10 = sbr.rel (0) target = $region9
  $region8: #{_lambda_.35} parent=0 // pred_region
    _
  $region9: #{_lambda_.35} parent=0 // pred_fallthru
    _
  %v12 = vld [vmem:[%s0] sm:$0xf]
  %v13 = vld [vmem:[%s0 + $0x4] sm:$0xf]
  %v14 = vld [vmem:[%s1] sm:$0xff]
  %v15 = vld [vmem:[%s1 + $0x8] sm:$0xff]
  %v16 = vld [vmem:[%s1 + $0x10] sm:$0xff]
  %v17 = vld [vmem:[%s1 + $0x18] sm:$0xff]
  %v18 = vld [vmem:[%s1 + $0x20] sm:$0xff]
  %v19 = vld [vmem:[%s1 + $0x28] sm:$0xff]
  %v20 = vld [vmem:[%s1 + $0x30] sm:$0xff]
  %v21 = vld [vmem:[%s1 + $0x38] sm:$0xff]
  %v22 = vld [vmem:[%s1 + $0x40] sm:$0xff]
  %v23 = vld [vmem:[%s1 + $0x48] sm:$0xff]
  %v24 = vld [vmem:[%s1 + $0x50] sm:$0xff]
  %v25 = vld [vmem:[%s1 + $0x58] sm:$0xff]
  %v26 = vld [vmem:[%s1 + $0x60] sm:$0xff]
  %v27 = vld [vmem:[%s1 + $0x68] sm:$0xff]
  %v28 = vld [vmem:[%s1 + $0x70] sm:$0xff]
  %v29 = vld [vmem:[%s1 + $0x78] sm:$0xff]
  %v30 = vld [vmem:[%s1 + $0x80] sm:$0xff]
  %v31 = vld [vmem:[%s1 + $0x88] sm:$0xff]
  %v32 = vld [vmem:[%s1 + $0x90] sm:$0xff]
  %v33 = vld [vmem:[%s1 + $0x98] sm:$0xff]
  %v36 = vunpack.c.l.b16 %v12
  %v37 = vunpack.c.l.b16 %v13
  %v38 = vpack.c.b16 %v37, %v36
  %v59 = vunpack.c.l.b16 %v14
  %v60 = vunpack.c.h.b16 %v14
  %v61 = vunpack.c.l.b16 %v15
  %v62 = vunpack.c.h.b16 %v15
  %v63 = vunpack.c.l.b16 %v16
  %v64 = vunpack.c.h.b16 %v16
  %v65 = vunpack.c.l.b16 %v17
  %v66 = vunpack.c.h.b16 %v17
  %v67 = vunpack.c.l.b16 %v18
  %v68 = vunpack.c.h.b16 %v18
  %v69 = vunpack.c.l.b16 %v19
  %v70 = vunpack.c.h.b16 %v19
  %v71 = vunpack.c.l.b16 %v20
  %v72 = vunpack.c.h.b16 %v20
  %v73 = vunpack.c.l.b16 %v21
  %v74 = vunpack.c.h.b16 %v21
  %v75 = vunpack.c.l.b16 %v22
  %v76 = vunpack.c.h.b16 %v22
  %v77 = vunpack.c.l.b16 %v23
  %v78 = vunpack.c.h.b16 %v23
  %v79 = vunpack.c.l.b16 %v24
  %v80 = vunpack.c.h.b16 %v24
  %v81 = vunpack.c.l.b16 %v25
  %v82 = vunpack.c.h.b16 %v25
  %v83 = vunpack.c.l.b16 %v26
  %v84 = vunpack.c.h.b16 %v26
  %v85 = vunpack.c.l.b16 %v27
  %v86 = vunpack.c.h.b16 %v27
  %v87 = vunpack.c.l.b16 %v28
  %v88 = vunpack.c.h.b16 %v28
  %v89 = vunpack.c.l.b16 %v29
  %v90 = vunpack.c.h.b16 %v29
  %v91 = vunpack.c.l.b16 %v30
  %v92 = vunpack.c.h.b16 %v30
  %v93 = vunpack.c.l.b16 %v31
  %v94 = vunpack.c.h.b16 %v31
  %v95 = vunpack.c.l.b16 %v32
  %v96 = vunpack.c.h.b16 %v32
  %v97 = vunpack.c.l.b16 %v33
  %v98 = vunpack.c.h.b16 %v33
  %v99 = vpack.c.b16 %v63, %v59
  %v100 = vpack.c.b16 %v64, %v60
  %v101 = vpack.c.b16 %v65, %v61
  %v102 = vpack.c.b16 %v66, %v62
  %v103 = vpack.c.b16 %v71, %v67
  %v104 = vpack.c.b16 %v72, %v68
  %v105 = vpack.c.b16 %v73, %v69
  %v106 = vpack.c.b16 %v74, %v70
  %v107 = vpack.c.b16 %v79, %v75
  %v108 = vpack.c.b16 %v80, %v76
  %v109 = vpack.c.b16 %v81, %v77
  %v110 = vpack.c.b16 %v82, %v78
  %v111 = vpack.c.b16 %v87, %v83
  %v112 = vpack.c.b16 %v88, %v84
  %v113 = vpack.c.b16 %v89, %v85
  %v114 = vpack.c.b16 %v90, %v86
  %v115 = vpack.c.b16 %v95, %v91
  %v116 = vpack.c.b16 %v96, %v92
  %v117 = vpack.c.b16 %v97, %v93
  %v118 = vpack.c.b16 %v98, %v94
  %vm139 = vcmask 654336
  %v141 = vsel %vm139, %v38, 0
  %143 = vmatprep.subr.bf16.mxu0 0
  %144 = vmatpush1.bf16.msra.mxu0 0
  %145 = vmatprep.subr.bf16.mxu0 0
  %146 = vmatpush1.bf16.msra.mxu0 0
  %147 = vmatprep.subr.bf16.mxu0 0
  %148 = vmatpush1.bf16.msra.mxu0 0
  %149 = vmatprep.subr.bf16.mxu0 %v116
  %150 = vmatpush1.bf16.msra.mxu0 %v115
  %151 = vmatprep.subr.bf16.mxu0 %v112
  %152 = vmatpush1.bf16.msra.mxu0 %v111
  %153 = vmatprep.subr.bf16.mxu0 %v108
  %154 = vmatpush1.bf16.msra.mxu0 %v107
  %155 = vmatprep.subr.bf16.mxu0 %v104
  %156 = vmatpush1.bf16.msra.mxu0 %v103
  %157 = vmatprep.subr.bf16.mxu0 %v100
  %158 = vmatpush1.bf16.msra.mxu0 %v99
  %159 = vmatprep.subr.bf16.mxu0 0
  %160 = vmatpush2.bf16.msra.mxu0 0
  %161 = vmatprep.subr.bf16.mxu0 0
  %162 = vmatpush2.bf16.msra.mxu0 0
  %163 = vmatprep.subr.bf16.mxu0 0
  %164 = vmatpush2.bf16.msra.mxu0 0
  %165 = vmatprep.subr.bf16.mxu0 0
  %166 = vmatpush2.bf16.msra.mxu0 0
  %167 = vmatprep.subr.bf16.mxu0 0
  %168 = vmatpush2.bf16.msra.mxu0 0
  %169 = vmatprep.subr.bf16.mxu0 0
  %170 = vmatpush2.bf16.msra.mxu0 0
  %171 = vmatprep.subr.bf16.mxu0 0
  %172 = vmatpush2.bf16.msra.mxu0 0
  %173 = vmatprep.subr.bf16.mxu0 0
  %174 = vmatpush2.bf16.msra.mxu0 0
  %175 = vmatprep.mubr.bf16.mxu0 0
  %176 = vmatmul.mubr.bf16.gmra.mxu0 %v141
  %v177 = vpop.f32.mrf.mxu0
  %v178 = vadd.f32 0.0, %v177
  %v179 = vpop.f32.mrf.mxu0
  %v180 = vadd.f32 0.0, %v179
  %v181 = vpop.f32.mrf.mxu0
  %v182 = vadd.f32 0.0, %v181
  %v183 = vpop.f32.mrf.mxu0
  %v184 = vadd.f32 0.0, %v183
  %185 = vdwg.mxu0
  %186 = vmatprep.subr.bf16.mxu0 0
  %187 = vmatpush1.bf16.msra.mxu0 0
  %188 = vmatprep.subr.bf16.mxu0 0
  %189 = vmatpush1.bf16.msra.mxu0 0
  %190 = vmatprep.subr.bf16.mxu0 0
  %191 = vmatpush1.bf16.msra.mxu0 0
  %192 = vmatprep.subr.bf16.mxu0 %v118
  %193 = vmatpush1.bf16.msra.mxu0 %v117
  %194 = vmatprep.subr.bf16.mxu0 %v114
  %195 = vmatpush1.bf16.msra.mxu0 %v113
  %196 = vmatprep.subr.bf16.mxu0 %v110
  %197 = vmatpush1.bf16.msra.mxu0 %v109
  %198 = vmatprep.subr.bf16.mxu0 %v106
  %199 = vmatpush1.bf16.msra.mxu0 %v105
  %200 = vmatprep.subr.bf16.mxu0 %v102
  %201 = vmatpush1.bf16.msra.mxu0 %v101
  %202 = vmatprep.subr.bf16.mxu0 0
  %203 = vmatpush2.bf16.msra.mxu0 0
  %204 = vmatprep.subr.bf16.mxu0 0
  %205 = vmatpush2.bf16.msra.mxu0 0
  %206 = vmatprep.subr.bf16.mxu0 0
  %207 = vmatpush2.bf16.msra.mxu0 0
  %208 = vmatprep.subr.bf16.mxu0 0
  %209 = vmatpush2.bf16.msra.mxu0 0
  %210 = vmatprep.subr.bf16.mxu0 0
  %211 = vmatpush2.bf16.msra.mxu0 0
  %212 = vmatprep.subr.bf16.mxu0 0
  %213 = vmatpush2.bf16.msra.mxu0 0
  %214 = vmatprep.subr.bf16.mxu0 0
  %215 = vmatpush2.bf16.msra.mxu0 0
  %216 = vmatprep.subr.bf16.mxu0 0
  %217 = vmatpush2.bf16.msra.mxu0 0
  %218 = vmatprep.mubr.bf16.mxu0 0
  %219 = vmatmul.mubr.bf16.gmra.mxu0 %v141
  %v220 = vpop.f32.mrf.mxu0
  %v221 = vadd.f32 0.0, %v220
  %v222 = vpop.f32.mrf.mxu0
  %v223 = vadd.f32 0.0, %v222
  %v224 = vpop.f32.mrf.mxu0
  %v225 = vadd.f32 0.0, %v224
  %v226 = vpop.f32.mrf.mxu0
  %v227 = vadd.f32 0.0, %v226
  %228 = vdwg.mxu0
  %229 = vst [vmem:[%s2] sm:$0xff] %v178
  %230 = vst [vmem:[%s2 + $0x8] sm:$0xff] %v180
  %231 = vst [vmem:[%s2 + $0x10] sm:$0xff] %v221
  %232 = vst [vmem:[%s2 + $0x18] sm:$0xff] %v223
  %233 = vst [vmem:[%s2 + $0x20] sm:$0xff] %v182
  %234 = vst [vmem:[%s2 + $0x28] sm:$0xff] %v184
  %235 = vst [vmem:[%s2 + $0x30] sm:$0xff] %v225
  %236 = vst [vmem:[%s2 + $0x38] sm:$0xff] %v227
  // Predicated region
  $region10: #{_lambda_.35} parent=0 // pred_check
    _
  $region11: #{_lambda_.35} parent=0 // pred_check_branch
    %238 = sbr.rel (0) target = $region13
  $region12: #{_lambda_.35} parent=0 // pred_region
    _
  $region13: #{_lambda_.35} parent=0 // pred_fallthru
    _
  // Predicated region
  $region14: #{_lambda_.35} parent=0 // pred_check
    _
  $region15: #{_lambda_.35} parent=0 // pred_check_branch
    %240 = sbr.rel (0) target = $region17
  $region16: #{_lambda_.35} parent=0 // pred_region
    _
  $region17: #{_lambda_.35} parent=0 // pred_fallthru
    _

</llo_original>
